<compile_context>
chip_gen: v7x
topology: tpu7x:2x2x1
jax: 0.10.0
libtpu: 0.0.40
codegen_flags: <defaults>
</compile_context>

<pallas_src>
import jax
import jax.numpy as jnp
from jax.experimental import pallas as pl
from jax.experimental.pallas import tpu as pltpu

IN_DIM, H1, H2, OUT_DIM = 784, 512, 128, 10


def _mlp_kernel(x_ref, w1_ref, b1_ref, w2_ref, b2_ref, w3_ref, b3_ref, o_ref):
    # Cast the x tile to bf16 in VMEM (rides free VPU slack); all dots are
    # bf16-operand / f32-accumulate on the MXU, elementwise math stays f32.
    x = x_ref[...].astype(jnp.bfloat16)
    h1 = jnp.dot(x, w1_ref[...], preferred_element_type=jnp.float32)
    h1 = jnp.maximum(h1 + b1_ref[...], 0.0)
    h2 = jnp.dot(h1.astype(jnp.bfloat16), w2_ref[...],
                 preferred_element_type=jnp.float32)
    h2 = jnp.maximum(h2 + b2_ref[...], 0.0)
    logits = jnp.dot(h2.astype(jnp.bfloat16), w3_ref[...],
                     preferred_element_type=jnp.float32)
    o_ref[...] = jax.nn.sigmoid(logits + b3_ref[...])


def prepare_params(params):
    """One-time parameter prep (cache the result): bf16 MXU-operand weights,
    f32 biases shaped (1, out).  Weights are (in, out): y = x @ W + b."""
    def bias(b):
        return jnp.asarray(b, jnp.float32).reshape(1, -1)
    return {
        "w1": jnp.asarray(params["w1"], jnp.bfloat16), "b1": bias(params["b1"]),
        "w2": jnp.asarray(params["w2"], jnp.bfloat16), "b2": bias(params["b2"]),
        "w3": jnp.asarray(params["w3"], jnp.bfloat16), "b3": bias(params["b3"]),
    }


def _choose_tb(B):
    """Batch tile: large tiles for HBM-roofline efficiency, >=2 tiles whenever
    possible so both v7x TensorCores get work; rows always a multiple of 8."""
    if B >= 2048:
        return 1024
    if B >= 1024:
        return 512
    if B >= 512:
        return 256
    if B >= 256:
        return 128
    half = -(-B // 2)                      # split tiny batches into two tiles
    return max(8, ((half + 7) // 8) * 8)


def d_forward(x, prepped, *, tb=None):
    """x: (B, 784), f32 or bf16.  prepped: output of prepare_params().
    Returns sigmoid(MLP(x)): (B, 10) f32."""
    B = x.shape[0]
    if tb is None:
        tb = _choose_tb(B)
    n_tiles = pl.cdiv(B, tb)
    Bp = n_tiles * tb
    if Bp != B:
        x = jnp.pad(x, ((0, Bp - B), (0, 0)))   # rows only; no K pad, no dtype pass

    # Weight/bias index_maps always return block (0,0): DMA'd once, VMEM-resident
    # across all batch tiles, while x/out tiles stream through double-buffered.
    resident = lambda shape: pl.BlockSpec(shape, lambda i: (0, 0))

    out = pl.pallas_call(
        _mlp_kernel,
        out_shape=jax.ShapeDtypeStruct((Bp, OUT_DIM), jnp.float32),
        grid=(n_tiles,),
        in_specs=[
            pl.BlockSpec((tb, IN_DIM), lambda i: (i, 0)),   # x tile, read once as-is
            resident((IN_DIM, H1)), resident((1, H1)),
            resident((H1, H2)),     resident((1, H2)),
            resident((H2, OUT_DIM)), resident((1, OUT_DIM)),
        ],
        out_specs=pl.BlockSpec((tb, OUT_DIM), lambda i: (i, 0)),
        compiler_params=pltpu.CompilerParams(
            dimension_semantics=("parallel",),              # megacore sharding on v7x
            vmem_limit_bytes=32 * 1024 * 1024,
        ),
    )(x, prepped["w1"], prepped["b1"], prepped["w2"], prepped["b2"],
      prepped["w3"], prepped["b3"])

    return out[:B] if Bp != B else out


def init_params(key):
    """Deterministic init mirroring PyTorch Linear's U(-1/sqrt(fan_in), +1/sqrt(fan_in)).
    Weights stored transposed vs. PyTorch, i.e. (in, out), so y = x @ W + b."""
    ks = jax.random.split(key, 6)

    def lin(kw, kb, fan_in, fan_out):
        bound = 1.0 / jnp.sqrt(float(fan_in))
        w = jax.random.uniform(kw, (fan_in, fan_out), jnp.float32, -bound, bound)
        b = jax.random.uniform(kb, (1, fan_out), jnp.float32, -bound, bound)
        return w, b

    w1, b1 = lin(ks[0], ks[1], IN_DIM, H1)
    w2, b2 = lin(ks[2], ks[3], H1, H2)
    w3, b3 = lin(ks[4], ks[5], H2, OUT_DIM)
    return {"w1": w1, "b1": b1, "w2": w2, "b2": b2, "w3": w3, "b3": b3}


if __name__ == "__main__":
    key = jax.random.PRNGKey(0)
    kx, kp = jax.random.split(key)

    B = 160
    x = jax.random.normal(kx, (B, IN_DIM), jnp.float32)
    params = init_params(kp)
    prepped = prepare_params(params)   # one-time, cached across forwards

    # Default tb -> two 80-row tiles, no padding (exercises multi-tile path).
    out = jax.block_until_ready(d_forward(x, prepped))
    assert out.shape == (B, OUT_DIM)
    # Explicit tb=128 -> Bp=256, exercises the batch-padding path.
    out_pad = jax.block_until_ready(d_forward(x, prepped, tb=128))
    assert out_pad.shape == (B, OUT_DIM)

    # Reference 1: pure-JAX with the same bf16-operand / f32-accumulate math.
    w1b, w2b, w3b = prepped["w1"], prepped["w2"], prepped["w3"]
    h1 = jnp.maximum(
        jnp.dot(x.astype(jnp.bfloat16), w1b, preferred_element_type=jnp.float32)
        + params["b1"], 0.0)
    h2 = jnp.maximum(
        jnp.dot(h1.astype(jnp.bfloat16), w2b, preferred_element_type=jnp.float32)
        + params["b2"], 0.0)
    ref_bf16 = jax.nn.sigmoid(
        jnp.dot(h2.astype(jnp.bfloat16), w3b, preferred_element_type=jnp.float32)
        + params["b3"])
    assert jnp.allclose(out, ref_bf16, atol=2e-3, rtol=2e-3)
    assert jnp.allclose(out_pad, ref_bf16, atol=2e-3, rtol=2e-3)
    assert jnp.allclose(out, out_pad, atol=1e-6, rtol=1e-6)

    # Reference 2: full-f32 PyTorch-equivalent math (semantics sanity check;
    # looser tolerance accounts for bf16 MXU operands).
    h1f = jnp.maximum(x @ params["w1"] + params["b1"], 0.0)
    h2f = jnp.maximum(h1f @ params["w2"] + params["b2"], 0.0)
    ref_f32 = jax.nn.sigmoid(h2f @ params["w3"] + params["b3"])
    assert jnp.allclose(out, ref_f32, atol=3e-2, rtol=3e-2)

    print("KERNEL_OK")
</pallas_src>

<mosaic_0001>
module attributes {stable_mosaic.version = 11 : i64} {
  func.func @_mlp_kernel(%arg0: i32, %arg1: memref<80x784xf32, #tpu.memory_space<vmem>>, %arg2: memref<784x512xbf16, #tpu.memory_space<vmem>>, %arg3: memref<1x512xf32, #tpu.memory_space<vmem>>, %arg4: memref<512x128xbf16, #tpu.memory_space<vmem>>, %arg5: memref<1x128xf32, #tpu.memory_space<vmem>>, %arg6: memref<128x10xbf16, #tpu.memory_space<vmem>>, %arg7: memref<1x10xf32, #tpu.memory_space<vmem>>, %arg8: memref<80x10xf32, #tpu.memory_space<vmem>>) attributes {dimension_semantics = [#tpu.dimension_semantics<parallel>], iteration_bounds = array<i64: 2>, scalar_prefetch = 0 : i64, scratch_operands = 0 : i64, tpu.core_type = #tpu.core_type<tc>, window_params = [{transform_indices = @transform_0, window_bounds = array<i64: 80, 784>}, {pipeline_mode = #tpu.pipeline_mode<synchronous>, transform_indices = @transform_1, window_bounds = array<i64: 784, 512>}, {pipeline_mode = #tpu.pipeline_mode<synchronous>, transform_indices = @transform_2, window_bounds = array<i64: 1, 512>}, {pipeline_mode = #tpu.pipeline_mode<synchronous>, transform_indices = @transform_3, window_bounds = array<i64: 512, 128>}, {pipeline_mode = #tpu.pipeline_mode<synchronous>, transform_indices = @transform_4, window_bounds = array<i64: 1, 128>}, {pipeline_mode = #tpu.pipeline_mode<synchronous>, transform_indices = @transform_5, window_bounds = array<i64: 128, 10>}, {pipeline_mode = #tpu.pipeline_mode<synchronous>, transform_indices = @transform_6, window_bounds = array<i64: 1, 10>}, {transform_indices = @transform_7, window_bounds = array<i64: 80, 10>}]} {
    %c0 = arith.constant 0 : index
    %c0_0 = arith.constant 0 : index
    %0 = vector.load %arg1[%c0, %c0_0] : memref<80x784xf32, #tpu.memory_space<vmem>>, vector<80x784xf32>
    %1 = arith.truncf %0 : vector<80x784xf32> to vector<80x784xbf16>
    %c0_1 = arith.constant 0 : index
    %c0_2 = arith.constant 0 : index
    %2 = vector.load %arg2[%c0_1, %c0_2] : memref<784x512xbf16, #tpu.memory_space<vmem>>, vector<784x512xbf16>
    %cst = arith.constant dense<0.000000e+00> : vector<80x512xf32>
    %3 = tpu.matmul %1, %2, %cst {dimension_numbers = #tpu.dot_dimension_numbers<[1], [0], [0], [1], [0, 0, 1, 1], [], []>} : vector<80x784xbf16>, vector<784x512xbf16>, vector<80x512xf32> -> vector<80x512xf32>
    %c0_3 = arith.constant 0 : index
    %c0_4 = arith.constant 0 : index
    %4 = vector.load %arg3[%c0_3, %c0_4] : memref<1x512xf32, #tpu.memory_space<vmem>>, vector<1x512xf32>
    %5 = vector.broadcast %4 : vector<1x512xf32> to vector<80x512xf32>
    %6 = arith.addf %3, %5 : vector<80x512xf32>
    %cst_5 = arith.constant 0.000000e+00 : f32
    %7 = vector.broadcast %cst_5 : f32 to vector<80x512xf32>
    %8 = arith.maximumf %6, %7 : vector<80x512xf32>
    %9 = arith.truncf %8 : vector<80x512xf32> to vector<80x512xbf16>
    %c0_6 = arith.constant 0 : index
    %c0_7 = arith.constant 0 : index
    %10 = vector.load %arg4[%c0_6, %c0_7] : memref<512x128xbf16, #tpu.memory_space<vmem>>, vector<512x128xbf16>
    %cst_8 = arith.constant dense<0.000000e+00> : vector<80x128xf32>
    %11 = tpu.matmul %9, %10, %cst_8 {dimension_numbers = #tpu.dot_dimension_numbers<[1], [0], [0], [1], [0, 0, 1, 1], [], []>} : vector<80x512xbf16>, vector<512x128xbf16>, vector<80x128xf32> -> vector<80x128xf32>
    %c0_9 = arith.constant 0 : index
    %c0_10 = arith.constant 0 : index
    %12 = vector.load %arg5[%c0_9, %c0_10] : memref<1x128xf32, #tpu.memory_space<vmem>>, vector<1x128xf32>
    %13 = vector.broadcast %12 : vector<1x128xf32> to vector<80x128xf32>
    %14 = arith.addf %11, %13 : vector<80x128xf32>
    %cst_11 = arith.constant 0.000000e+00 : f32
    %15 = vector.broadcast %cst_11 : f32 to vector<80x128xf32>
    %16 = arith.maximumf %14, %15 : vector<80x128xf32>
    %17 = arith.truncf %16 : vector<80x128xf32> to vector<80x128xbf16>
    %c0_12 = arith.constant 0 : index
    %c0_13 = arith.constant 0 : index
    %18 = vector.load %arg6[%c0_12, %c0_13] : memref<128x10xbf16, #tpu.memory_space<vmem>>, vector<128x10xbf16>
    %cst_14 = arith.constant dense<0.000000e+00> : vector<80x10xf32>
    %19 = tpu.matmul %17, %18, %cst_14 {dimension_numbers = #tpu.dot_dimension_numbers<[1], [0], [0], [1], [0, 0, 1, 1], [], []>} : vector<80x128xbf16>, vector<128x10xbf16>, vector<80x10xf32> -> vector<80x10xf32>
    %c0_15 = arith.constant 0 : index
    %c0_16 = arith.constant 0 : index
    %20 = vector.load %arg7[%c0_15, %c0_16] : memref<1x10xf32, #tpu.memory_space<vmem>>, vector<1x10xf32>
    %21 = vector.broadcast %20 : vector<1x10xf32> to vector<80x10xf32>
    %22 = arith.addf %19, %21 : vector<80x10xf32>
    %23 = arith.negf %22 : vector<80x10xf32>
    %24 = math.exp %23 : vector<80x10xf32>
    %cst_17 = arith.constant 1.000000e+00 : f32
    %25 = vector.broadcast %cst_17 : f32 to vector<80x10xf32>
    %26 = arith.addf %25, %24 : vector<80x10xf32>
    %27 = arith.divf %25, %26 : vector<80x10xf32>
    %c0_18 = arith.constant 0 : index
    %c0_19 = arith.constant 0 : index
    %28 = vector.load %arg8[%c0_18, %c0_19] : memref<80x10xf32, #tpu.memory_space<vmem>>, vector<80x10xf32>
    tpu.vector_store %arg8[%c0_18, %c0_19], %27 {strides = array<i32>} : memref<80x10xf32, #tpu.memory_space<vmem>>, vector<80x10xf32>,
    return
  }
  func.func @transform_0(%arg0: i32) -> (i32, i32) {
    %c0_i32 = arith.constant 0 : i32
    %c0_i32_0 = arith.constant 0 : i32
    return %arg0, %c0_i32 : i32, i32
  }
  func.func @transform_1(%arg0: i32) -> (i32, i32) {
    %c0_i32 = arith.constant 0 : i32
    %c0_i32_0 = arith.constant 0 : i32
    %c0_i32_1 = arith.constant 0 : i32
    return %c0_i32, %c0_i32_0 : i32, i32
  }
  func.func @transform_2(%arg0: i32) -> (i32, i32) {
    %c0_i32 = arith.constant 0 : i32
    %c0_i32_0 = arith.constant 0 : i32
    %c0_i32_1 = arith.constant 0 : i32
    return %c0_i32, %c0_i32_0 : i32, i32
  }
  func.func @transform_3(%arg0: i32) -> (i32, i32) {
    %c0_i32 = arith.constant 0 : i32
    %c0_i32_0 = arith.constant 0 : i32
    %c0_i32_1 = arith.constant 0 : i32
    return %c0_i32, %c0_i32_0 : i32, i32
  }
  func.func @transform_4(%arg0: i32) -> (i32, i32) {
    %c0_i32 = arith.constant 0 : i32
    %c0_i32_0 = arith.constant 0 : i32
    %c0_i32_1 = arith.constant 0 : i32
    return %c0_i32, %c0_i32_0 : i32, i32
  }
  func.func @transform_5(%arg0: i32) -> (i32, i32) {
    %c0_i32 = arith.constant 0 : i32
    %c0_i32_0 = arith.constant 0 : i32
    %c0_i32_1 = arith.constant 0 : i32
    return %c0_i32, %c0_i32_0 : i32, i32
  }
  func.func @transform_6(%arg0: i32) -> (i32, i32) {
    %c0_i32 = arith.constant 0 : i32
    %c0_i32_0 = arith.constant 0 : i32
    %c0_i32_1 = arith.constant 0 : i32
    return %c0_i32, %c0_i32_0 : i32, i32
  }
  func.func @transform_7(%arg0: i32) -> (i32, i32) {
    %c0_i32 = arith.constant 0 : i32
    %c0_i32_0 = arith.constant 0 : i32
    return %arg0, %c0_i32 : i32, i32
  }
}

</mosaic_0001>

<llo_original>
// kernel: tpu_custom_call.1
$region0: #{tpu_custom_call.1}
  #allocation0 [shape = 'u32[]', space=smem, size = 0x4, offset = 0x4, fixed_abs, tag = 'smem constant byte address 0x4 - core index']
  #allocation1 [shape = 'u32[144,128]{1,0:T(1,128)}', space=vmem, size = 0x12000, scoped, tag = 'internal scratch']
  %s0 = inlined_call_operand.hbm [shape: f32[160,784], index: 0, kind: input, shape index: {}]
  %s1 = inlined_call_operand.hbm [shape: bf16[784,512], index: 1, kind: input, shape index: {}]
  %s2 = inlined_call_operand.vmem [shape: f32[1,512], index: 2, kind: input, shape index: {}]
  %s3 = inlined_call_operand.hbm [shape: bf16[512,128], index: 3, kind: input, shape index: {}]
  %s4 = inlined_call_operand.vmem [shape: f32[1,128], index: 4, kind: input, shape index: {}]
  %s5 = inlined_call_operand.vmem [shape: bf16[128,10], index: 5, kind: input, shape index: {}]
  %s6 = inlined_call_operand.vmem [shape: f32[1,10], index: 6, kind: input, shape index: {}]
  %s7 = inlined_call_operand.vmem [shape: f32[160,10], index: 7, kind: output, shape index: {}]
  %s8 = sld [smem:[#allocation0]]
  $region73: #{tpu_custom_call.1} parent=0
    _
  %s10 = ssub.s32 1, %s8
  %s11 = scalar_select 0, %s10, %s8
  $region1: #{tpu_custom_call.1} parent=0
    #allocation2 [shape = 'u8[573440]{0}', space=vmem, size = 0x8c000, scoped, tag = 'input window, operand 0']
    #allocation3 [shape = 's32[2]{0}', space=sflag, size = 0x8, scoped, tag = 'scoped memory for tpu_custom_call.1']
    #allocation4 [shape = 'u8[802816]{0}', space=vmem, size = 0xc4000, scoped, tag = 'input window, operand 1, single buffered']
    #allocation5 [shape = 's32[1]{0}', space=sflag, size = 0x4, scoped, tag = 'scoped memory for tpu_custom_call.1']
    #allocation6 [shape = 'u8[131072]{0}', space=vmem, size = 0x20000, scoped, tag = 'input window, operand 3, single buffered']
    %12 = vsyncpa [#allocation3], 0
    %s13 = scalar_lea.sflag [#allocation3], 1
    %14 = vsyncpa %s13, 0
    %15 = vsyncpa [#allocation5], 0
    loop: start=0, step=1, limit=4
    $region2: #{tpu_custom_call.1} parent=1 // loop_pre_header
      _
    $region3: #{tpu_custom_call.1} parent=1 // loop_header
      %s17 = sphi 0, %s21
      %p18 = scmp.ge.s32.totalorder %s17, 4
      %s27 = sphi 0, %s29
      %s30 = sphi 0, %s27
      %s31 = sphi 0, %s30
      %s47 = sphi 0, %s31
      %s51 = sphi 0, %s51
      %s53 = sphi 0, %s51
      %s54 = sphi 0, %s53
      %s68 = sphi 0, %s54
      %s72 = sphi 0, %s72
      %s74 = sphi 0, %s72
      %s75 = sphi 0, %s74
      %s89 = sphi 0, %s75
      %s93 = sphi 0, %s93
      %s95 = sphi 0, %s93
      %s96 = sphi 0, %s95
      %s110 = sphi 0, %s96
      %s114 = sphi 0, %s114
      %s116 = sphi 0, %s114
      %s117 = sphi 0, %s116
      %s131 = sphi 0, %s117
      %s135 = sphi 0, %s135
      %s137 = sphi 0, %s135
      %s138 = sphi 0, %s137
      %s152 = sphi 0, %s138
      %s156 = sphi 0, %s156
      %s158 = sphi 0, %s156
      %s159 = sphi 0, %s158
      %s173 = sphi 0, %s159
      %s179 = sphi 0, %s181
      %s182 = sphi 0, %s179
      %s183 = sphi 0, %s182
      %s199 = sphi 0, %s183
    $region4: #{tpu_custom_call.1} parent=1 // loop_header_branch
      %20 = sbr.rel (%p18) target = $region8
    $region5: #{tpu_custom_call.1} parent=1 // loop_body
      %s22 = ssub.s32 %s17, 1
      %s23 = ssub.s32 %s17, 2
      %s24 = sadd.s32 %s17, 1
      %s25 = ssub.s32 %s17, %s24
      %p26 = scmp.eq.s32.totalorder %s25, 0
      %s28 = sadd.s32 %s27, 1
      %s29 = scalar_select %p26, %s27, %s28
      %p32 = pneg %p26
      %p33 = scmp.eq.s32.totalorder %s17, 1
      %p34 = por %p32, %p33
      %p35 = scmp.ne.s32.totalorder %s27, %s30
      %p36 = scmp.eq.s32.totalorder %s17, 0
      %p37 = por %p35, %p36
      %p38 = scmp.ne.s32.totalorder %s27, %s30
      %p39 = scmp.eq.s32.totalorder %s22, 1
      %p40 = por %p38, %p39
      %p41 = scmp.ne.s32.totalorder %s30, %s31
      %p42 = scmp.eq.s32.totalorder %s22, 0
      %p43 = por %p41, %p42
      %p44 = scmp.ne.s32.totalorder %s30, %s31
      %p45 = scmp.eq.s32.totalorder %s23, 1
      %p46 = por %p44, %p45
      %p48 = scmp.ne.s32.totalorder %s31, %s47
      %p49 = scmp.eq.s32.totalorder %s23, 0
      %p50 = por %p48, %p49
      %s52 = sadd.s32 %s51, 1
      %p55 = scmp.eq.s32.totalorder %s17, 1
      %p56 = scmp.ne.s32.totalorder %s51, %s53
      %p57 = scmp.eq.s32.totalorder %s17, 0
      %p58 = por %p56, %p57
      %p59 = scmp.ne.s32.totalorder %s51, %s53
      %p60 = scmp.eq.s32.totalorder %s22, 1
      %p61 = por %p59, %p60
      %p62 = scmp.ne.s32.totalorder %s53, %s54
      %p63 = scmp.eq.s32.totalorder %s22, 0
      %p64 = por %p62, %p63
      %p65 = scmp.ne.s32.totalorder %s53, %s54
      %p66 = scmp.eq.s32.totalorder %s23, 1
      %p67 = por %p65, %p66
      %p69 = scmp.ne.s32.totalorder %s54, %s68
      %p70 = scmp.eq.s32.totalorder %s23, 0
      %p71 = por %p69, %p70
      %s73 = sadd.s32 %s72, 1
      %p76 = scmp.eq.s32.totalorder %s17, 1
      %p77 = scmp.ne.s32.totalorder %s72, %s74
      %p78 = scmp.eq.s32.totalorder %s17, 0
      %p79 = por %p77, %p78
      %p80 = scmp.ne.s32.totalorder %s72, %s74
      %p81 = scmp.eq.s32.totalorder %s22, 1
      %p82 = por %p80, %p81
      %p83 = scmp.ne.s32.totalorder %s74, %s75
      %p84 = scmp.eq.s32.totalorder %s22, 0
      %p85 = por %p83, %p84
      %p86 = scmp.ne.s32.totalorder %s74, %s75
      %p87 = scmp.eq.s32.totalorder %s23, 1
      %p88 = por %p86, %p87
      %p90 = scmp.ne.s32.totalorder %s75, %s89
      %p91 = scmp.eq.s32.totalorder %s23, 0
      %p92 = por %p90, %p91
      %s94 = sadd.s32 %s93, 1
      %p97 = scmp.eq.s32.totalorder %s17, 1
      %p98 = scmp.ne.s32.totalorder %s93, %s95
      %p99 = scmp.eq.s32.totalorder %s17, 0
      %p100 = por %p98, %p99
      %p101 = scmp.ne.s32.totalorder %s93, %s95
      %p102 = scmp.eq.s32.totalorder %s22, 1
      %p103 = por %p101, %p102
      %p104 = scmp.ne.s32.totalorder %s95, %s96
      %p105 = scmp.eq.s32.totalorder %s22, 0
      %p106 = por %p104, %p105
      %p107 = scmp.ne.s32.totalorder %s95, %s96
      %p108 = scmp.eq.s32.totalorder %s23, 1
      %p109 = por %p107, %p108
      %p111 = scmp.ne.s32.totalorder %s96, %s110
      %p112 = scmp.eq.s32.totalorder %s23, 0
      %p113 = por %p111, %p112
      %s115 = sadd.s32 %s114, 1
      %p118 = scmp.eq.s32.totalorder %s17, 1
      %p119 = scmp.ne.s32.totalorder %s114, %s116
      %p120 = scmp.eq.s32.totalorder %s17, 0
      %p121 = por %p119, %p120
      %p122 = scmp.ne.s32.totalorder %s114, %s116
      %p123 = scmp.eq.s32.totalorder %s22, 1
      %p124 = por %p122, %p123
      %p125 = scmp.ne.s32.totalorder %s116, %s117
      %p126 = scmp.eq.s32.totalorder %s22, 0
      %p127 = por %p125, %p126
      %p128 = scmp.ne.s32.totalorder %s116, %s117
      %p129 = scmp.eq.s32.totalorder %s23, 1
      %p130 = por %p128, %p129
      %p132 = scmp.ne.s32.totalorder %s117, %s131
      %p133 = scmp.eq.s32.totalorder %s23, 0
      %p134 = por %p132, %p133
      %s136 = sadd.s32 %s135, 1
      %p139 = scmp.eq.s32.totalorder %s17, 1
      %p140 = scmp.ne.s32.totalorder %s135, %s137
      %p141 = scmp.eq.s32.totalorder %s17, 0
      %p142 = por %p140, %p141
      %p143 = scmp.ne.s32.totalorder %s135, %s137
      %p144 = scmp.eq.s32.totalorder %s22, 1
      %p145 = por %p143, %p144
      %p146 = scmp.ne.s32.totalorder %s137, %s138
      %p147 = scmp.eq.s32.totalorder %s22, 0
      %p148 = por %p146, %p147
      %p149 = scmp.ne.s32.totalorder %s137, %s138
      %p150 = scmp.eq.s32.totalorder %s23, 1
      %p151 = por %p149, %p150
      %p153 = scmp.ne.s32.totalorder %s138, %s152
      %p154 = scmp.eq.s32.totalorder %s23, 0
      %p155 = por %p153, %p154
      %s157 = sadd.s32 %s156, 1
      %p160 = scmp.eq.s32.totalorder %s17, 1
      %p161 = scmp.ne.s32.totalorder %s156, %s158
      %p162 = scmp.eq.s32.totalorder %s17, 0
      %p163 = por %p161, %p162
      %p164 = scmp.ne.s32.totalorder %s156, %s158
      %p165 = scmp.eq.s32.totalorder %s22, 1
      %p166 = por %p164, %p165
      %p167 = scmp.ne.s32.totalorder %s158, %s159
      %p168 = scmp.eq.s32.totalorder %s22, 0
      %p169 = por %p167, %p168
      %p170 = scmp.ne.s32.totalorder %s158, %s159
      %p171 = scmp.eq.s32.totalorder %s23, 1
      %p172 = por %p170, %p171
      %p174 = scmp.ne.s32.totalorder %s159, %s173
      %p175 = scmp.eq.s32.totalorder %s23, 0
      %p176 = por %p174, %p175
      %s177 = ssub.s32 %s17, %s24
      %p178 = scmp.eq.s32.totalorder %s177, 0
      %s180 = sadd.s32 %s179, 1
      %s181 = scalar_select %p178, %s179, %s180
      %p184 = pneg %p178
      %p185 = scmp.eq.s32.totalorder %s17, 1
      %p186 = por %p184, %p185
      %p187 = scmp.ne.s32.totalorder %s179, %s182
      %p188 = scmp.eq.s32.totalorder %s17, 0
      %p189 = por %p187, %p188
      %p190 = scmp.ne.s32.totalorder %s179, %s182
      %p191 = scmp.eq.s32.totalorder %s22, 1
      %p192 = por %p190, %p191
      %p193 = scmp.ne.s32.totalorder %s182, %s183
      %p194 = scmp.eq.s32.totalorder %s22, 0
      %p195 = por %p193, %p194
      %p196 = scmp.ne.s32.totalorder %s182, %s183
      %p197 = scmp.eq.s32.totalorder %s23, 1
      %p198 = por %p196, %p197
      %p200 = scmp.ne.s32.totalorder %s183, %s199
      %p201 = scmp.eq.s32.totalorder %s23, 0
      %p202 = por %p200, %p201
      %p203 = scmp.le.s32.totalorder 1, %s17
      %p204 = scmp.lt.s32.totalorder %s17, 3
      %p205 = pnand %p203, %p204
      %p206 = pneg %p205
      // Predicated region
      $region9: #{tpu_custom_call.1} parent=5 // pred_check
        _
      $region10: #{tpu_custom_call.1} parent=5 // pred_check_branch
        %208 = sbr.rel (%p205) target = $region12
      $region11: #{tpu_custom_call.1} parent=5 // pred_region
        %s209 = ssub.s32 %s17, 1
        // Predicated region
        $region13: #{tpu_custom_call.1} parent=11 // pred_check
          %p210 = pneg %p64
        $region14: #{tpu_custom_call.1} parent=11 // pred_check_branch
          %212 = sbr.rel (%p210) target = $region16
        $region15: #{tpu_custom_call.1} parent=11 // pred_region
          %s214 = ssub.s32 25088, 25088
          %215 = vsyncadd [#allocation5], %s214
          %s216 = sshll.u32 [#allocation4], 4
          %s217 = int_to_ptr.vmem [resolvable:$true] %s216
          %222 = dma.hbm_to_vmem [thread:$0]  %s1, 25088, %s217, [#allocation5], 256, 256, 16
        $region16: #{tpu_custom_call.1} parent=11 // pred_fallthru
          _
        // Predicated region
        $region17: #{tpu_custom_call.1} parent=11 // pred_check
          %p223 = pneg %p85
        $region18: #{tpu_custom_call.1} parent=11 // pred_check_branch
          %225 = sbr.rel (%p223) target = $region20
        $region19: #{tpu_custom_call.1} parent=11 // pred_region
          _
        $region20: #{tpu_custom_call.1} parent=11 // pred_fallthru
          _
        // Predicated region
        $region21: #{tpu_custom_call.1} parent=11 // pred_check
          %p226 = pneg %p106
        $region22: #{tpu_custom_call.1} parent=11 // pred_check_branch
          %228 = sbr.rel (%p226) target = $region24
        $region23: #{tpu_custom_call.1} parent=11 // pred_region
          %s230 = ssub.s32 4096, 4096
          %231 = vsyncadd [#allocation5], %s230
          %s232 = sshll.u32 [#allocation6], 4
          %s233 = int_to_ptr.vmem [resolvable:$true] %s232
          %238 = dma.hbm_to_vmem [thread:$0]  %s3, 4096, %s233, [#allocation5], 64, 64, 4
        $region24: #{tpu_custom_call.1} parent=11 // pred_fallthru
          _
        // Predicated region
        $region25: #{tpu_custom_call.1} parent=11 // pred_check
          %p239 = pneg %p127
        $region26: #{tpu_custom_call.1} parent=11 // pred_check_branch
          %241 = sbr.rel (%p239) target = $region28
        $region27: #{tpu_custom_call.1} parent=11 // pred_region
          _
        $region28: #{tpu_custom_call.1} parent=11 // pred_fallthru
          _
        // Predicated region
        $region29: #{tpu_custom_call.1} parent=11 // pred_check
          %p242 = pneg %p148
        $region30: #{tpu_custom_call.1} parent=11 // pred_check_branch
          %244 = sbr.rel (%p242) target = $region32
        $region31: #{tpu_custom_call.1} parent=11 // pred_region
          _
        $region32: #{tpu_custom_call.1} parent=11 // pred_fallthru
          _
        // Predicated region
        $region33: #{tpu_custom_call.1} parent=11 // pred_check
          %p245 = pneg %p169
        $region34: #{tpu_custom_call.1} parent=11 // pred_check_branch
          %247 = sbr.rel (%p245) target = $region36
        $region35: #{tpu_custom_call.1} parent=11 // pred_region
          _
        $region36: #{tpu_custom_call.1} parent=11 // pred_fallthru
          _
      $region12: #{tpu_custom_call.1} parent=5 // pred_fallthru
        _
      %p248 = scmp.lt.s32.totalorder %s17, 2
      // Predicated region
      $region37: #{tpu_custom_call.1} parent=5 // pred_check
        %p249 = pneg %p248
      $region38: #{tpu_custom_call.1} parent=5 // pred_check_branch
        %251 = sbr.rel (%p249) target = $region40
      $region39: #{tpu_custom_call.1} parent=5 // pred_region
        // Predicated region
        $region41: #{tpu_custom_call.1} parent=39 // pred_check
          %p252 = pneg %p37
        $region42: #{tpu_custom_call.1} parent=39 // pred_check_branch
          %254 = sbr.rel (%p252) target = $region44
        $region43: #{tpu_custom_call.1} parent=39 // pred_region
          %s255 = sand.u32 %s27, 1
          %s256 = scalar_lea.sflag [#allocation3], %s255
          %s257 = sand.u32 %s27, 1
          %s258 = smul.addr %s257, 560
          %s259 = scalar_lea.vmem [#allocation2], %s258
          %s260 = smul.u32 10, %s17
          %s262 = ssub.s32 8960, 8960
          %263 = vsyncadd %s256, %s262
          %s264 = smul.addr %s260, 7
          %s265 = smul.addr %s264, 128
          %s266 = scalar_lea.hbm %s0, %s265
          %s267 = sshll.u32 %s259, 4
          %s268 = int_to_ptr.vmem [resolvable:$true] %s267
          %273 = dma.hbm_to_vmem [thread:$0]  %s266, 8960, %s268, %s256, 896, 896, 56
        $region44: #{tpu_custom_call.1} parent=39 // pred_fallthru
          _
      $region40: #{tpu_custom_call.1} parent=5 // pred_fallthru
        _
      %p274 = scmp.le.s32.totalorder 1, %s17
      %p275 = scmp.lt.s32.totalorder %s17, 3
      %p276 = pnand %p274, %p275
      %p277 = pneg %p276
      // Predicated region
      $region45: #{tpu_custom_call.1} parent=5 // pred_check
        _
      $region46: #{tpu_custom_call.1} parent=5 // pred_check_branch
        %279 = sbr.rel (%p276) target = $region48
      $region47: #{tpu_custom_call.1} parent=5 // pred_region
        %s280 = ssub.s32 %s17, 1
        %s281 = sand.u32 %s30, 1
        %s282 = scalar_lea.sflag [#allocation3], %s281
        %s283 = sand.u32 %s30, 1
        %s284 = smul.addr %s283, 560
        %s285 = scalar_lea.vmem [#allocation2], %s284
        // Predicated region
        $region49: #{tpu_custom_call.1} parent=47 // pred_check
          %p286 = pneg %p43
        $region50: #{tpu_custom_call.1} parent=47 // pred_check_branch
          %288 = sbr.rel (%p286) target = $region52
        $region51: #{tpu_custom_call.1} parent=47 // pred_region
          %289 = dma.done %s282, 8960
        $region52: #{tpu_custom_call.1} parent=47 // pred_fallthru
          _
        // Predicated region
        $region53: #{tpu_custom_call.1} parent=47 // pred_check
          %p290 = pneg %p64
        $region54: #{tpu_custom_call.1} parent=47 // pred_check_branch
          %292 = sbr.rel (%p290) target = $region56
        $region55: #{tpu_custom_call.1} parent=47 // pred_region
          %293 = dma.done [#allocation5], 25088
        $region56: #{tpu_custom_call.1} parent=47 // pred_fallthru
          _
        // Predicated region
        $region57: #{tpu_custom_call.1} parent=47 // pred_check
          %p294 = pneg %p106
        $region58: #{tpu_custom_call.1} parent=47 // pred_check_branch
          %296 = sbr.rel (%p294) target = $region60
        $region59: #{tpu_custom_call.1} parent=47 // pred_region
          %297 = dma.done [#allocation5], 4096
        $region60: #{tpu_custom_call.1} parent=47 // pred_fallthru
          _
        %s298 = sand.u32 %s30, 1
        %s299 = scalar_lea.sflag [#allocation3], %s298
        %s300 = sand.u32 %s30, 1
        %s301 = smul.addr %s300, 560
        %s302 = scalar_lea.vmem [#allocation2], %s301
        %p303 = pneg %p43
        %p304 = pneg %p40
        %p305 = pneg %p64
        %p306 = pneg %p61
        %p307 = pneg %p85
        %p308 = pneg %p82
        %p309 = pneg %p106
        %p310 = pneg %p103
        %p311 = pneg %p127
        %p312 = pneg %p124
        %p313 = pneg %p148
        %p314 = pneg %p145
        %p315 = pneg %p169
        %p316 = pneg %p166
        %p317 = pneg %p195
        %p318 = pneg %p192
        %s319 = smul.u32 10, %s22
        %p320 = scmp.lt.s32.totalorder %s319, 19
        %s321 = scalar_select %p320, %s319, 19
        %s322 = smul.addr %s321, 8
        %s323 = scalar_lea.vmem %s7, %s322
        %s324 = smul.u32 10, %s22
        %s325 = smul.u32 10, %s22
        %p326 = scmp.lt.s32.totalorder %s325, 19
        %s327 = scalar_select %p326, %s325, 19
        %s328 = smul.addr %s327, 8
        %s329 = scalar_lea.vmem %s7, %s328
        %s330 = smul.u32 10, %s22
        %v332 = vld [vmem:[%s285] sm:$0xff]
        %v333 = vld [vmem:[%s285 + $0x8] sm:$0xff]
        %v334 = vld [vmem:[%s285 + $0x10] sm:$0xff]
        %v335 = vld [vmem:[%s285 + $0x18] sm:$0xff]
        %v336 = vld [vmem:[%s285 + $0x20] sm:$0xff]
        %v337 = vld [vmem:[%s285 + $0x28] sm:$0xff]
        %v338 = vld [vmem:[%s285 + $0x30] sm:$0xff]
        %v339 = vld [vmem:[%s285 + $0x38] sm:$0xff]
        %v340 = vld [vmem:[%s285 + $0x40] sm:$0xff]
        %v341 = vld [vmem:[%s285 + $0x48] sm:$0xff]
        %v342 = vld [vmem:[%s285 + $0x50] sm:$0xff]
        %v343 = vld [vmem:[%s285 + $0x58] sm:$0xff]
        %v344 = vld [vmem:[%s285 + $0x60] sm:$0xff]
        %v345 = vld [vmem:[%s285 + $0x68] sm:$0xff]
        %v346 = vld [vmem:[%s285 + $0x70] sm:$0xff]
        %v347 = vld [vmem:[%s285 + $0x78] sm:$0xff]
        %v348 = vld [vmem:[%s285 + $0x80] sm:$0xff]
        %v349 = vld [vmem:[%s285 + $0x88] sm:$0xff]
        %v350 = vld [vmem:[%s285 + $0x90] sm:$0xff]
        %v351 = vld [vmem:[%s285 + $0x98] sm:$0xff]
        %v352 = vld [vmem:[%s285 + $0xa0] sm:$0xff]
        %v353 = vld [vmem:[%s285 + $0xa8] sm:$0xff]
        %v354 = vld [vmem:[%s285 + $0xb0] sm:$0xff]
        %v355 = vld [vmem:[%s285 + $0xb8] sm:$0xff]
        %v356 = vld [vmem:[%s285 + $0xc0] sm:$0xff]
        %v357 = vld [vmem:[%s285 + $0xc8] sm:$0xff]
        %v358 = vld [vmem:[%s285 + $0xd0] sm:$0xff]
        %v359 = vld [vmem:[%s285 + $0xd8] sm:$0xff]
        %v360 = vld [vmem:[%s285 + $0xe0] sm:$0xff]
        %v361 = vld [vmem:[%s285 + $0xe8] sm:$0xff]
        %v362 = vld [vmem:[%s285 + $0xf0] sm:$0xff]
        %v363 = vld [vmem:[%s285 + $0xf8] sm:$0xff]
        %v364 = vld [vmem:[%s285 + $0x100] sm:$0xff]
        %v365 = vld [vmem:[%s285 + $0x108] sm:$0xff]
        %v366 = vld [vmem:[%s285 + $0x110] sm:$0xff]
        %v367 = vld [vmem:[%s285 + $0x118] sm:$0xff]
        %v368 = vld [vmem:[%s285 + $0x120] sm:$0xff]
        %v369 = vld [vmem:[%s285 + $0x128] sm:$0xff]
        %v370 = vld [vmem:[%s285 + $0x130] sm:$0xff]
        %v371 = vld [vmem:[%s285 + $0x138] sm:$0xff]
        %v372 = vld [vmem:[%s285 + $0x140] sm:$0xff]
        %v373 = vld [vmem:[%s285 + $0x148] sm:$0xff]
        %v374 = vld [vmem:[%s285 + $0x150] sm:$0xff]
        %v375 = vld [vmem:[%s285 + $0x158] sm:$0xff]
        %v376 = vld [vmem:[%s285 + $0x160] sm:$0xff]
        %v377 = vld [vmem:[%s285 + $0x168] sm:$0xff]
        %v378 = vld [vmem:[%s285 + $0x170] sm:$0xff]
        %v379 = vld [vmem:[%s285 + $0x178] sm:$0xff]
        %v380 = vld [vmem:[%s285 + $0x180] sm:$0xff]
        %v381 = vld [vmem:[%s285 + $0x188] sm:$0xff]
        %v382 = vld [vmem:[%s285 + $0x190] sm:$0xff]
        %v383 = vld [vmem:[%s285 + $0x198] sm:$0xff]
        %v384 = vld [vmem:[%s285 + $0x1a0] sm:$0xff]
        %v385 = vld [vmem:[%s285 + $0x1a8] sm:$0xff]
        %v386 = vld [vmem:[%s285 + $0x1b0] sm:$0xff]
        %v387 = vld [vmem:[%s285 + $0x1b8] sm:$0xff]
        %v388 = vld [vmem:[%s285 + $0x1c0] sm:$0xff]
        %v389 = vld [vmem:[%s285 + $0x1c8] sm:$0xff]
        %v390 = vld [vmem:[%s285 + $0x1d0] sm:$0xff]
        %v391 = vld [vmem:[%s285 + $0x1d8] sm:$0xff]
        %v392 = vld [vmem:[%s285 + $0x1e0] sm:$0xff]
        %v393 = vld [vmem:[%s285 + $0x1e8] sm:$0xff]
        %v394 = vld [vmem:[%s285 + $0x1f0] sm:$0xff]
        %v395 = vld [vmem:[%s285 + $0x1f8] sm:$0xff]
        %v396 = vld [vmem:[%s285 + $0x200] sm:$0xff]
        %v397 = vld [vmem:[%s285 + $0x208] sm:$0xff]
        %v398 = vld [vmem:[%s285 + $0x210] sm:$0xff]
        %v399 = vld [vmem:[%s285 + $0x218] sm:$0xff]
        %v400 = vld [vmem:[%s285 + $0x220] sm:$0xff]
        %v401 = vld [vmem:[%s285 + $0x228] sm:$0xff]
        %v402 = vpack.c.bf16 %v339, %v332
        %v403 = vpack.c.bf16 %v340, %v333
        %v404 = vpack.c.bf16 %v341, %v334
        %v405 = vpack.c.bf16 %v342, %v335
        %v406 = vpack.c.bf16 %v343, %v336
        %v407 = vpack.c.bf16 %v344, %v337
        %v408 = vpack.c.bf16 %v345, %v338
        %v409 = vpack.c.bf16 %v353, %v346
        %v410 = vpack.c.bf16 %v354, %v347
        %v411 = vpack.c.bf16 %v355, %v348
        %v412 = vpack.c.bf16 %v356, %v349
        %v413 = vpack.c.bf16 %v357, %v350
        %v414 = vpack.c.bf16 %v358, %v351
        %v415 = vpack.c.bf16 %v359, %v352
        %v416 = vpack.c.bf16 %v367, %v360
        %v417 = vpack.c.bf16 %v368, %v361
        %v418 = vpack.c.bf16 %v369, %v362
        %v419 = vpack.c.bf16 %v370, %v363
        %v420 = vpack.c.bf16 %v371, %v364
        %v421 = vpack.c.bf16 %v372, %v365
        %v422 = vpack.c.bf16 %v373, %v366
        %v423 = vpack.c.bf16 %v381, %v374
        %v424 = vpack.c.bf16 %v382, %v375
        %v425 = vpack.c.bf16 %v383, %v376
        %v426 = vpack.c.bf16 %v384, %v377
        %v427 = vpack.c.bf16 %v385, %v378
        %v428 = vpack.c.bf16 %v386, %v379
        %v429 = vpack.c.bf16 %v387, %v380
        %v430 = vpack.c.bf16 %v395, %v388
        %v431 = vpack.c.bf16 %v396, %v389
        %v432 = vpack.c.bf16 %v397, %v390
        %v433 = vpack.c.bf16 %v398, %v391
        %v434 = vpack.c.bf16 %v399, %v392
        %v435 = vpack.c.bf16 %v400, %v393
        %v436 = vpack.c.bf16 %v401, %v394
        %v437 = vld [vmem:[#allocation4] sm:$0xff]
        %v438 = vld [vmem:[#allocation4 + $0x8] sm:$0xff]
        %v439 = vld [vmem:[#allocation4 + $0x10] sm:$0xff]
        %v440 = vld [vmem:[#allocation4 + $0x18] sm:$0xff]
        %v441 = vld [vmem:[#allocation4 + $0x20] sm:$0xff]
        %v442 = vld [vmem:[#allocation4 + $0x28] sm:$0xff]
        %v443 = vld [vmem:[#allocation4 + $0x30] sm:$0xff]
        %v444 = vld [vmem:[#allocation4 + $0x38] sm:$0xff]
        %v445 = vld [vmem:[#allocation4 + $0x40] sm:$0xff]
        %v446 = vld [vmem:[#allocation4 + $0x48] sm:$0xff]
        %v447 = vld [vmem:[#allocation4 + $0x50] sm:$0xff]
        %v448 = vld [vmem:[#allocation4 + $0x58] sm:$0xff]
        %v449 = vld [vmem:[#allocation4 + $0x60] sm:$0xff]
        %v450 = vld [vmem:[#allocation4 + $0x68] sm:$0xff]
        %v451 = vld [vmem:[#allocation4 + $0x70] sm:$0xff]
        %v452 = vld [vmem:[#allocation4 + $0x78] sm:$0xff]
        %v453 = vld [vmem:[#allocation4 + $0x80] sm:$0xff]
        %v454 = vld [vmem:[#allocation4 + $0x88] sm:$0xff]
        %v455 = vld [vmem:[#allocation4 + $0x90] sm:$0xff]
        %v456 = vld [vmem:[#allocation4 + $0x98] sm:$0xff]
        %v457 = vld [vmem:[#allocation4 + $0xa0] sm:$0xff]
        %v458 = vld [vmem:[#allocation4 + $0xa8] sm:$0xff]
        %v459 = vld [vmem:[#allocation4 + $0xb0] sm:$0xff]
        %v460 = vld [vmem:[#allocation4 + $0xb8] sm:$0xff]
        %v461 = vld [vmem:[#allocation4 + $0xc0] sm:$0xff]
        %v462 = vld [vmem:[#allocation4 + $0xc8] sm:$0xff]
        %v463 = vld [vmem:[#allocation4 + $0xd0] sm:$0xff]
        %v464 = vld [vmem:[#allocation4 + $0xd8] sm:$0xff]
        %v465 = vld [vmem:[#allocation4 + $0xe0] sm:$0xff]
        %v466 = vld [vmem:[#allocation4 + $0xe8] sm:$0xff]
        %v467 = vld [vmem:[#allocation4 + $0xf0] sm:$0xff]
        %v468 = vld [vmem:[#allocation4 + $0xf8] sm:$0xff]
        %v469 = vld [vmem:[#allocation4 + $0x100] sm:$0xff]
        %v470 = vld [vmem:[#allocation4 + $0x108] sm:$0xff]
        %v471 = vld [vmem:[#allocation4 + $0x110] sm:$0xff]
        %v472 = vld [vmem:[#allocation4 + $0x118] sm:$0xff]
        %v473 = vld [vmem:[#allocation4 + $0x120] sm:$0xff]
        %v474 = vld [vmem:[#allocation4 + $0x128] sm:$0xff]
        %v475 = vld [vmem:[#allocation4 + $0x130] sm:$0xff]
        %v476 = vld [vmem:[#allocation4 + $0x138] sm:$0xff]
        %v477 = vld [vmem:[#allocation4 + $0x140] sm:$0xff]
        %v478 = vld [vmem:[#allocation4 + $0x148] sm:$0xff]
        %v479 = vld [vmem:[#allocation4 + $0x150] sm:$0xff]
        %v480 = vld [vmem:[#allocation4 + $0x158] sm:$0xff]
        %v481 = vld [vmem:[#allocation4 + $0x160] sm:$0xff]
        %v482 = vld [vmem:[#allocation4 + $0x168] sm:$0xff]
        %v483 = vld [vmem:[#allocation4 + $0x170] sm:$0xff]
        %v484 = vld [vmem:[#allocation4 + $0x178] sm:$0xff]
        %v485 = vld [vmem:[#allocation4 + $0x180] sm:$0xff]
        %v486 = vld [vmem:[#allocation4 + $0x188] sm:$0xff]
        %v487 = vld [vmem:[#allocation4 + $0x190] sm:$0xff]
        %v488 = vld [vmem:[#allocation4 + $0x198] sm:$0xff]
        %v489 = vld [vmem:[#allocation4 + $0x1a0] sm:$0xff]
        %v490 = vld [vmem:[#allocation4 + $0x1a8] sm:$0xff]
        %v491 = vld [vmem:[#allocation4 + $0x1b0] sm:$0xff]
        %v492 = vld [vmem:[#allocation4 + $0x1b8] sm:$0xff]
        %v493 = vld [vmem:[#allocation4 + $0x1c0] sm:$0xff]
        %v494 = vld [vmem:[#allocation4 + $0x1c8] sm:$0xff]
        %v495 = vld [vmem:[#allocation4 + $0x1d0] sm:$0xff]
        %v496 = vld [vmem:[#allocation4 + $0x1d8] sm:$0xff]
        %v497 = vld [vmem:[#allocation4 + $0x1e0] sm:$0xff]
        %v498 = vld [vmem:[#allocation4 + $0x1e8] sm:$0xff]
        %v499 = vld [vmem:[#allocation4 + $0x1f0] sm:$0xff]
        %v500 = vld [vmem:[#allocation4 + $0x1f8] sm:$0xff]
        %v501 = vld [vmem:[#allocation4 + $0x200] sm:$0xff]
        %v502 = vld [vmem:[#allocation4 + $0x208] sm:$0xff]
        %v503 = vld [vmem:[#allocation4 + $0x210] sm:$0xff]
        %v504 = vld [vmem:[#allocation4 + $0x218] sm:$0xff]
        %v505 = vld [vmem:[#allocation4 + $0x220] sm:$0xff]
        %v506 = vld [vmem:[#allocation4 + $0x228] sm:$0xff]
        %v507 = vld [vmem:[#allocation4 + $0x230] sm:$0xff]
        %v508 = vld [vmem:[#allocation4 + $0x238] sm:$0xff]
        %v509 = vld [vmem:[#allocation4 + $0x240] sm:$0xff]
        %v510 = vld [vmem:[#allocation4 + $0x248] sm:$0xff]
        %v511 = vld [vmem:[#allocation4 + $0x250] sm:$0xff]
        %v512 = vld [vmem:[#allocation4 + $0x258] sm:$0xff]
        %v513 = vld [vmem:[#allocation4 + $0x260] sm:$0xff]
        %v514 = vld [vmem:[#allocation4 + $0x268] sm:$0xff]
        %v515 = vld [vmem:[#allocation4 + $0x270] sm:$0xff]
        %v516 = vld [vmem:[#allocation4 + $0x278] sm:$0xff]
        %v517 = vld [vmem:[#allocation4 + $0x280] sm:$0xff]
        %v518 = vld [vmem:[#allocation4 + $0x288] sm:$0xff]
        %v519 = vld [vmem:[#allocation4 + $0x290] sm:$0xff]
        %v520 = vld [vmem:[#allocation4 + $0x298] sm:$0xff]
        %v521 = vld [vmem:[#allocation4 + $0x2a0] sm:$0xff]
        %v522 = vld [vmem:[#allocation4 + $0x2a8] sm:$0xff]
        %v523 = vld [vmem:[#allocation4 + $0x2b0] sm:$0xff]
        %v524 = vld [vmem:[#allocation4 + $0x2b8] sm:$0xff]
        %v525 = vld [vmem:[#allocation4 + $0x2c0] sm:$0xff]
        %v526 = vld [vmem:[#allocation4 + $0x2c8] sm:$0xff]
        %v527 = vld [vmem:[#allocation4 + $0x2d0] sm:$0xff]
        %v528 = vld [vmem:[#allocation4 + $0x2d8] sm:$0xff]
        %v529 = vld [vmem:[#allocation4 + $0x2e0] sm:$0xff]
        %v530 = vld [vmem:[#allocation4 + $0x2e8] sm:$0xff]
        %v531 = vld [vmem:[#allocation4 + $0x2f0] sm:$0xff]
        %v532 = vld [vmem:[#allocation4 + $0x2f8] sm:$0xff]
        %v533 = vld [vmem:[#allocation4 + $0x300] sm:$0xff]
        %v534 = vld [vmem:[#allocation4 + $0x308] sm:$0xff]
        %v535 = vld [vmem:[#allocation4 + $0x310] sm:$0xff]
        %v536 = vld [vmem:[#allocation4 + $0x318] sm:$0xff]
        %v537 = vld [vmem:[#allocation4 + $0x320] sm:$0xff]
        %v538 = vld [vmem:[#allocation4 + $0x328] sm:$0xff]
        %v539 = vld [vmem:[#allocation4 + $0x330] sm:$0xff]
        %v540 = vld [vmem:[#allocation4 + $0x338] sm:$0xff]
        %v541 = vld [vmem:[#allocation4 + $0x340] sm:$0xff]
        %v542 = vld [vmem:[#allocation4 + $0x348] sm:$0xff]
        %v543 = vld [vmem:[#allocation4 + $0x350] sm:$0xff]
        %v544 = vld [vmem:[#allocation4 + $0x358] sm:$0xff]
        %v545 = vld [vmem:[#allocation4 + $0x360] sm:$0xff]
        %v546 = vld [vmem:[#allocation4 + $0x368] sm:$0xff]
        %v547 = vld [vmem:[#allocation4 + $0x370] sm:$0xff]
        %v548 = vld [vmem:[#allocation4 + $0x378] sm:$0xff]
        %v549 = vld [vmem:[#allocation4 + $0x380] sm:$0xff]
        %v550 = vld [vmem:[#allocation4 + $0x388] sm:$0xff]
        %v551 = vld [vmem:[#allocation4 + $0x390] sm:$0xff]
        %v552 = vld [vmem:[#allocation4 + $0x398] sm:$0xff]
        %v553 = vld [vmem:[#allocation4 + $0x3a0] sm:$0xff]
        %v554 = vld [vmem:[#allocation4 + $0x3a8] sm:$0xff]
        %v555 = vld [vmem:[#allocation4 + $0x3b0] sm:$0xff]
        %v556 = vld [vmem:[#allocation4 + $0x3b8] sm:$0xff]
        %v557 = vld [vmem:[#allocation4 + $0x3c0] sm:$0xff]
        %v558 = vld [vmem:[#allocation4 + $0x3c8] sm:$0xff]
        %v559 = vld [vmem:[#allocation4 + $0x3d0] sm:$0xff]
        %v560 = vld [vmem:[#allocation4 + $0x3d8] sm:$0xff]
        %v561 = vld [vmem:[#allocation4 + $0x3e0] sm:$0xff]
        %v562 = vld [vmem:[#allocation4 + $0x3e8] sm:$0xff]
        %v563 = vld [vmem:[#allocation4 + $0x3f0] sm:$0xff]
        %v564 = vld [vmem:[#allocation4 + $0x3f8] sm:$0xff]
        %v565 = vld [vmem:[#allocation4 + $0x400] sm:$0xff]
        %v566 = vld [vmem:[#allocation4 + $0x408] sm:$0xff]
        %v567 = vld [vmem:[#allocation4 + $0x410] sm:$0xff]
        %v568 = vld [vmem:[#allocation4 + $0x418] sm:$0xff]
        %v569 = vld [vmem:[#allocation4 + $0x420] sm:$0xff]
        %v570 = vld [vmem:[#allocation4 + $0x428] sm:$0xff]
        %v571 = vld [vmem:[#allocation4 + $0x430] sm:$0xff]
        %v572 = vld [vmem:[#allocation4 + $0x438] sm:$0xff]
        %v573 = vld [vmem:[#allocation4 + $0x440] sm:$0xff]
        %v574 = vld [vmem:[#allocation4 + $0x448] sm:$0xff]
        %v575 = vld [vmem:[#allocation4 + $0x450] sm:$0xff]
        %v576 = vld [vmem:[#allocation4 + $0x458] sm:$0xff]
        %v577 = vld [vmem:[#allocation4 + $0x460] sm:$0xff]
        %v578 = vld [vmem:[#allocation4 + $0x468] sm:$0xff]
        %v579 = vld [vmem:[#allocation4 + $0x470] sm:$0xff]
        %v580 = vld [vmem:[#allocation4 + $0x478] sm:$0xff]
        %v581 = vld [vmem:[#allocation4 + $0x480] sm:$0xff]
        %v582 = vld [vmem:[#allocation4 + $0x488] sm:$0xff]
        %v583 = vld [vmem:[#allocation4 + $0x490] sm:$0xff]
        %v584 = vld [vmem:[#allocation4 + $0x498] sm:$0xff]
        %v585 = vld [vmem:[#allocation4 + $0x4a0] sm:$0xff]
        %v586 = vld [vmem:[#allocation4 + $0x4a8] sm:$0xff]
        %v587 = vld [vmem:[#allocation4 + $0x4b0] sm:$0xff]
        %v588 = vld [vmem:[#allocation4 + $0x4b8] sm:$0xff]
        %v589 = vld [vmem:[#allocation4 + $0x4c0] sm:$0xff]
        %v590 = vld [vmem:[#allocation4 + $0x4c8] sm:$0xff]
        %v591 = vld [vmem:[#allocation4 + $0x4d0] sm:$0xff]
        %v592 = vld [vmem:[#allocation4 + $0x4d8] sm:$0xff]
        %v593 = vld [vmem:[#allocation4 + $0x4e0] sm:$0xff]
        %v594 = vld [vmem:[#allocation4 + $0x4e8] sm:$0xff]
        %v595 = vld [vmem:[#allocation4 + $0x4f0] sm:$0xff]
        %v596 = vld [vmem:[#allocation4 + $0x4f8] sm:$0xff]
        %v597 = vld [vmem:[#allocation4 + $0x500] sm:$0xff]
        %v598 = vld [vmem:[#allocation4 + $0x508] sm:$0xff]
        %v599 = vld [vmem:[#allocation4 + $0x510] sm:$0xff]
        %v600 = vld [vmem:[#allocation4 + $0x518] sm:$0xff]
        %v601 = vld [vmem:[#allocation4 + $0x520] sm:$0xff]
        %v602 = vld [vmem:[#allocation4 + $0x528] sm:$0xff]
        %v603 = vld [vmem:[#allocation4 + $0x530] sm:$0xff]
        %v604 = vld [vmem:[#allocation4 + $0x538] sm:$0xff]
        %v605 = vld [vmem:[#allocation4 + $0x540] sm:$0xff]
        %v606 = vld [vmem:[#allocation4 + $0x548] sm:$0xff]
        %v607 = vld [vmem:[#allocation4 + $0x550] sm:$0xff]
        %v608 = vld [vmem:[#allocation4 + $0x558] sm:$0xff]
        %v609 = vld [vmem:[#allocation4 + $0x560] sm:$0xff]
        %v610 = vld [vmem:[#allocation4 + $0x568] sm:$0xff]
        %v611 = vld [vmem:[#allocation4 + $0x570] sm:$0xff]
        %v612 = vld [vmem:[#allocation4 + $0x578] sm:$0xff]
        %v613 = vld [vmem:[#allocation4 + $0x580] sm:$0xff]
        %v614 = vld [vmem:[#allocation4 + $0x588] sm:$0xff]
        %v615 = vld [vmem:[#allocation4 + $0x590] sm:$0xff]
        %v616 = vld [vmem:[#allocation4 + $0x598] sm:$0xff]
        %v617 = vld [vmem:[#allocation4 + $0x5a0] sm:$0xff]
        %v618 = vld [vmem:[#allocation4 + $0x5a8] sm:$0xff]
        %v619 = vld [vmem:[#allocation4 + $0x5b0] sm:$0xff]
        %v620 = vld [vmem:[#allocation4 + $0x5b8] sm:$0xff]
        %v621 = vld [vmem:[#allocation4 + $0x5c0] sm:$0xff]
        %v622 = vld [vmem:[#allocation4 + $0x5c8] sm:$0xff]
        %v623 = vld [vmem:[#allocation4 + $0x5d0] sm:$0xff]
        %v624 = vld [vmem:[#allocation4 + $0x5d8] sm:$0xff]
        %v625 = vld [vmem:[#allocation4 + $0x5e0] sm:$0xff]
        %v626 = vld [vmem:[#allocation4 + $0x5e8] sm:$0xff]
        %v627 = vld [vmem:[#allocation4 + $0x5f0] sm:$0xff]
        %v628 = vld [vmem:[#allocation4 + $0x5f8] sm:$0xff]
        %v629 = vld [vmem:[#allocation4 + $0x600] sm:$0xff]
        %v630 = vld [vmem:[#allocation4 + $0x608] sm:$0xff]
        %v631 = vld [vmem:[#allocation4 + $0x610] sm:$0xff]
        %v632 = vld [vmem:[#allocation4 + $0x618] sm:$0xff]
        %v633 = vld [vmem:[%s2] sm:$0xf]
        %v635 = vlaneseq
        %v636 = vshrl.u32 %v635, 7
        %v637 = vsub.s32 0, %v636
        %v638 = vrot.slane %v633, %v637
        %v639 = vlaneseq
        %v640 = vshrl.u32 %v639, 7
        %v641 = vsub.s32 1, %v640
        %v642 = vrot.slane %v633, %v641
        %v643 = vlaneseq
        %v644 = vshrl.u32 %v643, 7
        %v645 = vsub.s32 2, %v644
        %v646 = vrot.slane %v633, %v645
        %v647 = vlaneseq
        %v648 = vshrl.u32 %v647, 7
        %v649 = vsub.s32 3, %v648
        %v650 = vrot.slane %v633, %v649
        %v851 = vunpack.c.l.b16 %v437
        %v852 = vunpack.c.h.b16 %v437
        %v853 = vunpack.c.l.b16 %v438
        %v854 = vunpack.c.h.b16 %v438
        %v855 = vunpack.c.l.b16 %v439
        %v856 = vunpack.c.h.b16 %v439
        %v857 = vunpack.c.l.b16 %v440
        %v858 = vunpack.c.h.b16 %v440
        %v859 = vunpack.c.l.b16 %v441
        %v860 = vunpack.c.h.b16 %v441
        %v861 = vunpack.c.l.b16 %v442
        %v862 = vunpack.c.h.b16 %v442
        %v863 = vunpack.c.l.b16 %v443
        %v864 = vunpack.c.h.b16 %v443
        %v865 = vunpack.c.l.b16 %v444
        %v866 = vunpack.c.h.b16 %v444
        %v867 = vunpack.c.l.b16 %v445
        %v868 = vunpack.c.h.b16 %v445
        %v869 = vunpack.c.l.b16 %v446
        %v870 = vunpack.c.h.b16 %v446
        %v871 = vunpack.c.l.b16 %v447
        %v872 = vunpack.c.h.b16 %v447
        %v873 = vunpack.c.l.b16 %v448
        %v874 = vunpack.c.h.b16 %v448
        %v875 = vunpack.c.l.b16 %v449
        %v876 = vunpack.c.h.b16 %v449
        %v877 = vunpack.c.l.b16 %v450
        %v878 = vunpack.c.h.b16 %v450
        %v879 = vunpack.c.l.b16 %v451
        %v880 = vunpack.c.h.b16 %v451
        %v881 = vunpack.c.l.b16 %v452
        %v882 = vunpack.c.h.b16 %v452
        %v883 = vunpack.c.l.b16 %v453
        %v884 = vunpack.c.h.b16 %v453
        %v885 = vunpack.c.l.b16 %v454
        %v886 = vunpack.c.h.b16 %v454
        %v887 = vunpack.c.l.b16 %v455
        %v888 = vunpack.c.h.b16 %v455
        %v889 = vunpack.c.l.b16 %v456
        %v890 = vunpack.c.h.b16 %v456
        %v891 = vunpack.c.l.b16 %v457
        %v892 = vunpack.c.h.b16 %v457
        %v893 = vunpack.c.l.b16 %v458
        %v894 = vunpack.c.h.b16 %v458
        %v895 = vunpack.c.l.b16 %v459
        %v896 = vunpack.c.h.b16 %v459
        %v897 = vunpack.c.l.b16 %v460
        %v898 = vunpack.c.h.b16 %v460
        %v899 = vunpack.c.l.b16 %v461
        %v900 = vunpack.c.h.b16 %v461
        %v901 = vunpack.c.l.b16 %v462
        %v902 = vunpack.c.h.b16 %v462
        %v903 = vunpack.c.l.b16 %v463
        %v904 = vunpack.c.h.b16 %v463
        %v905 = vunpack.c.l.b16 %v464
        %v906 = vunpack.c.h.b16 %v464
        %v907 = vunpack.c.l.b16 %v465
        %v908 = vunpack.c.h.b16 %v465
        %v909 = vunpack.c.l.b16 %v466
        %v910 = vunpack.c.h.b16 %v466
        %v911 = vunpack.c.l.b16 %v467
        %v912 = vunpack.c.h.b16 %v467
        %v913 = vunpack.c.l.b16 %v468
        %v914 = vunpack.c.h.b16 %v468
        %v915 = vunpack.c.l.b16 %v469
        %v916 = vunpack.c.h.b16 %v469
        %v917 = vunpack.c.l.b16 %v470
        %v918 = vunpack.c.h.b16 %v470
        %v919 = vunpack.c.l.b16 %v471
        %v920 = vunpack.c.h.b16 %v471
        %v921 = vunpack.c.l.b16 %v472
        %v922 = vunpack.c.h.b16 %v472
        %v923 = vunpack.c.l.b16 %v473
        %v924 = vunpack.c.h.b16 %v473
        %v925 = vunpack.c.l.b16 %v474
        %v926 = vunpack.c.h.b16 %v474
        %v927 = vunpack.c.l.b16 %v475
        %v928 = vunpack.c.h.b16 %v475
        %v929 = vunpack.c.l.b16 %v476
        %v930 = vunpack.c.h.b16 %v476
        %v931 = vunpack.c.l.b16 %v477
        %v932 = vunpack.c.h.b16 %v477
        %v933 = vunpack.c.l.b16 %v478
        %v934 = vunpack.c.h.b16 %v478
        %v935 = vunpack.c.l.b16 %v479
        %v936 = vunpack.c.h.b16 %v479
        %v937 = vunpack.c.l.b16 %v480
        %v938 = vunpack.c.h.b16 %v480
        %v939 = vunpack.c.l.b16 %v481
        %v940 = vunpack.c.h.b16 %v481
        %v941 = vunpack.c.l.b16 %v482
        %v942 = vunpack.c.h.b16 %v482
        %v943 = vunpack.c.l.b16 %v483
        %v944 = vunpack.c.h.b16 %v483
        %v945 = vunpack.c.l.b16 %v484
        %v946 = vunpack.c.h.b16 %v484
        %v947 = vunpack.c.l.b16 %v485
        %v948 = vunpack.c.h.b16 %v485
        %v949 = vunpack.c.l.b16 %v486
        %v950 = vunpack.c.h.b16 %v486
        %v951 = vunpack.c.l.b16 %v487
        %v952 = vunpack.c.h.b16 %v487
        %v953 = vunpack.c.l.b16 %v488
        %v954 = vunpack.c.h.b16 %v488
        %v955 = vunpack.c.l.b16 %v489
        %v956 = vunpack.c.h.b16 %v489
        %v957 = vunpack.c.l.b16 %v490
        %v958 = vunpack.c.h.b16 %v490
        %v959 = vunpack.c.l.b16 %v491
        %v960 = vunpack.c.h.b16 %v491
        %v961 = vunpack.c.l.b16 %v492
        %v962 = vunpack.c.h.b16 %v492
        %v963 = vunpack.c.l.b16 %v493
        %v964 = vunpack.c.h.b16 %v493
        %v965 = vunpack.c.l.b16 %v494
        %v966 = vunpack.c.h.b16 %v494
        %v967 = vunpack.c.l.b16 %v495
        %v968 = vunpack.c.h.b16 %v495
        %v969 = vunpack.c.l.b16 %v496
        %v970 = vunpack.c.h.b16 %v496
        %v971 = vunpack.c.l.b16 %v497
        %v972 = vunpack.c.h.b16 %v497
        %v973 = vunpack.c.l.b16 %v498
        %v974 = vunpack.c.h.b16 %v498
        %v975 = vunpack.c.l.b16 %v499
        %v976 = vunpack.c.h.b16 %v499
        %v977 = vunpack.c.l.b16 %v500
        %v978 = vunpack.c.h.b16 %v500
        %v979 = vunpack.c.l.b16 %v501
        %v980 = vunpack.c.h.b16 %v501
        %v981 = vunpack.c.l.b16 %v502
        %v982 = vunpack.c.h.b16 %v502
        %v983 = vunpack.c.l.b16 %v503
        %v984 = vunpack.c.h.b16 %v503
        %v985 = vunpack.c.l.b16 %v504
        %v986 = vunpack.c.h.b16 %v504
        %v987 = vunpack.c.l.b16 %v505
        %v988 = vunpack.c.h.b16 %v505
        %v989 = vunpack.c.l.b16 %v506
        %v990 = vunpack.c.h.b16 %v506
        %v991 = vunpack.c.l.b16 %v507
        %v992 = vunpack.c.h.b16 %v507
        %v993 = vunpack.c.l.b16 %v508
        %v994 = vunpack.c.h.b16 %v508
        %v995 = vunpack.c.l.b16 %v509
        %v996 = vunpack.c.h.b16 %v509
        %v997 = vunpack.c.l.b16 %v510
        %v998 = vunpack.c.h.b16 %v510
        %v999 = vunpack.c.l.b16 %v511
        %v1000 = vunpack.c.h.b16 %v511
        %v1001 = vunpack.c.l.b16 %v512
        %v1002 = vunpack.c.h.b16 %v512
        %v1003 = vunpack.c.l.b16 %v513
        %v1004 = vunpack.c.h.b16 %v513
        %v1005 = vunpack.c.l.b16 %v514
        %v1006 = vunpack.c.h.b16 %v514
        %v1007 = vunpack.c.l.b16 %v515
        %v1008 = vunpack.c.h.b16 %v515
        %v1009 = vunpack.c.l.b16 %v516
        %v1010 = vunpack.c.h.b16 %v516
        %v1011 = vunpack.c.l.b16 %v517
        %v1012 = vunpack.c.h.b16 %v517
        %v1013 = vunpack.c.l.b16 %v518
        %v1014 = vunpack.c.h.b16 %v518
        %v1015 = vunpack.c.l.b16 %v519
        %v1016 = vunpack.c.h.b16 %v519
        %v1017 = vunpack.c.l.b16 %v520
        %v1018 = vunpack.c.h.b16 %v520
        %v1019 = vunpack.c.l.b16 %v521
        %v1020 = vunpack.c.h.b16 %v521
        %v1021 = vunpack.c.l.b16 %v522
        %v1022 = vunpack.c.h.b16 %v522
        %v1023 = vunpack.c.l.b16 %v523
        %v1024 = vunpack.c.h.b16 %v523
        %v1025 = vunpack.c.l.b16 %v524
        %v1026 = vunpack.c.h.b16 %v524
        %v1027 = vunpack.c.l.b16 %v525
        %v1028 = vunpack.c.h.b16 %v525
        %v1029 = vunpack.c.l.b16 %v526
        %v1030 = vunpack.c.h.b16 %v526
        %v1031 = vunpack.c.l.b16 %v527
        %v1032 = vunpack.c.h.b16 %v527
        %v1033 = vunpack.c.l.b16 %v528
        %v1034 = vunpack.c.h.b16 %v528
        %v1035 = vunpack.c.l.b16 %v529
        %v1036 = vunpack.c.h.b16 %v529
        %v1037 = vunpack.c.l.b16 %v530
        %v1038 = vunpack.c.h.b16 %v530
        %v1039 = vunpack.c.l.b16 %v531
        %v1040 = vunpack.c.h.b16 %v531
        %v1041 = vunpack.c.l.b16 %v532
        %v1042 = vunpack.c.h.b16 %v532
        %v1043 = vunpack.c.l.b16 %v533
        %v1044 = vunpack.c.h.b16 %v533
        %v1045 = vunpack.c.l.b16 %v534
        %v1046 = vunpack.c.h.b16 %v534
        %v1047 = vunpack.c.l.b16 %v535
        %v1048 = vunpack.c.h.b16 %v535
        %v1049 = vunpack.c.l.b16 %v536
        %v1050 = vunpack.c.h.b16 %v536
        %v1051 = vunpack.c.l.b16 %v537
        %v1052 = vunpack.c.h.b16 %v537
        %v1053 = vunpack.c.l.b16 %v538
        %v1054 = vunpack.c.h.b16 %v538
        %v1055 = vunpack.c.l.b16 %v539
        %v1056 = vunpack.c.h.b16 %v539
        %v1057 = vunpack.c.l.b16 %v540
        %v1058 = vunpack.c.h.b16 %v540
        %v1059 = vunpack.c.l.b16 %v541
        %v1060 = vunpack.c.h.b16 %v541
        %v1061 = vunpack.c.l.b16 %v542
        %v1062 = vunpack.c.h.b16 %v542
        %v1063 = vunpack.c.l.b16 %v543
        %v1064 = vunpack.c.h.b16 %v543
        %v1065 = vunpack.c.l.b16 %v544
        %v1066 = vunpack.c.h.b16 %v544
        %v1067 = vunpack.c.l.b16 %v545
        %v1068 = vunpack.c.h.b16 %v545
        %v1069 = vunpack.c.l.b16 %v546
        %v1070 = vunpack.c.h.b16 %v546
        %v1071 = vunpack.c.l.b16 %v547
        %v1072 = vunpack.c.h.b16 %v547
        %v1073 = vunpack.c.l.b16 %v548
        %v1074 = vunpack.c.h.b16 %v548
        %v1075 = vunpack.c.l.b16 %v549
        %v1076 = vunpack.c.h.b16 %v549
        %v1077 = vunpack.c.l.b16 %v550
        %v1078 = vunpack.c.h.b16 %v550
        %v1079 = vunpack.c.l.b16 %v551
        %v1080 = vunpack.c.h.b16 %v551
        %v1081 = vunpack.c.l.b16 %v552
        %v1082 = vunpack.c.h.b16 %v552
        %v1083 = vunpack.c.l.b16 %v553
        %v1084 = vunpack.c.h.b16 %v553
        %v1085 = vunpack.c.l.b16 %v554
        %v1086 = vunpack.c.h.b16 %v554
        %v1087 = vunpack.c.l.b16 %v555
        %v1088 = vunpack.c.h.b16 %v555
        %v1089 = vunpack.c.l.b16 %v556
        %v1090 = vunpack.c.h.b16 %v556
        %v1091 = vunpack.c.l.b16 %v557
        %v1092 = vunpack.c.h.b16 %v557
        %v1093 = vunpack.c.l.b16 %v558
        %v1094 = vunpack.c.h.b16 %v558
        %v1095 = vunpack.c.l.b16 %v559
        %v1096 = vunpack.c.h.b16 %v559
        %v1097 = vunpack.c.l.b16 %v560
        %v1098 = vunpack.c.h.b16 %v560
        %v1099 = vunpack.c.l.b16 %v561
        %v1100 = vunpack.c.h.b16 %v561
        %v1101 = vunpack.c.l.b16 %v562
        %v1102 = vunpack.c.h.b16 %v562
        %v1103 = vunpack.c.l.b16 %v563
        %v1104 = vunpack.c.h.b16 %v563
        %v1105 = vunpack.c.l.b16 %v564
        %v1106 = vunpack.c.h.b16 %v564
        %v1107 = vunpack.c.l.b16 %v565
        %v1108 = vunpack.c.h.b16 %v565
        %v1109 = vunpack.c.l.b16 %v566
        %v1110 = vunpack.c.h.b16 %v566
        %v1111 = vunpack.c.l.b16 %v567
        %v1112 = vunpack.c.h.b16 %v567
        %v1113 = vunpack.c.l.b16 %v568
        %v1114 = vunpack.c.h.b16 %v568
        %v1115 = vunpack.c.l.b16 %v569
        %v1116 = vunpack.c.h.b16 %v569
        %v1117 = vunpack.c.l.b16 %v570
        %v1118 = vunpack.c.h.b16 %v570
        %v1119 = vunpack.c.l.b16 %v571
        %v1120 = vunpack.c.h.b16 %v571
        %v1121 = vunpack.c.l.b16 %v572
        %v1122 = vunpack.c.h.b16 %v572
        %v1123 = vunpack.c.l.b16 %v573
        %v1124 = vunpack.c.h.b16 %v573
        %v1125 = vunpack.c.l.b16 %v574
        %v1126 = vunpack.c.h.b16 %v574
        %v1127 = vunpack.c.l.b16 %v575
        %v1128 = vunpack.c.h.b16 %v575
        %v1129 = vunpack.c.l.b16 %v576
        %v1130 = vunpack.c.h.b16 %v576
        %v1131 = vunpack.c.l.b16 %v577
        %v1132 = vunpack.c.h.b16 %v577
        %v1133 = vunpack.c.l.b16 %v578
        %v1134 = vunpack.c.h.b16 %v578
        %v1135 = vunpack.c.l.b16 %v579
        %v1136 = vunpack.c.h.b16 %v579
        %v1137 = vunpack.c.l.b16 %v580
        %v1138 = vunpack.c.h.b16 %v580
        %v1139 = vunpack.c.l.b16 %v581
        %v1140 = vunpack.c.h.b16 %v581
        %v1141 = vunpack.c.l.b16 %v582
        %v1142 = vunpack.c.h.b16 %v582
        %v1143 = vunpack.c.l.b16 %v583
        %v1144 = vunpack.c.h.b16 %v583
        %v1145 = vunpack.c.l.b16 %v584
        %v1146 = vunpack.c.h.b16 %v584
        %v1147 = vunpack.c.l.b16 %v585
        %v1148 = vunpack.c.h.b16 %v585
        %v1149 = vunpack.c.l.b16 %v586
        %v1150 = vunpack.c.h.b16 %v586
        %v1151 = vunpack.c.l.b16 %v587
        %v1152 = vunpack.c.h.b16 %v587
        %v1153 = vunpack.c.l.b16 %v588
        %v1154 = vunpack.c.h.b16 %v588
        %v1155 = vunpack.c.l.b16 %v589
        %v1156 = vunpack.c.h.b16 %v589
        %v1157 = vunpack.c.l.b16 %v590
        %v1158 = vunpack.c.h.b16 %v590
        %v1159 = vunpack.c.l.b16 %v591
        %v1160 = vunpack.c.h.b16 %v591
        %v1161 = vunpack.c.l.b16 %v592
        %v1162 = vunpack.c.h.b16 %v592
        %v1163 = vunpack.c.l.b16 %v593
        %v1164 = vunpack.c.h.b16 %v593
        %v1165 = vunpack.c.l.b16 %v594
        %v1166 = vunpack.c.h.b16 %v594
        %v1167 = vunpack.c.l.b16 %v595
        %v1168 = vunpack.c.h.b16 %v595
        %v1169 = vunpack.c.l.b16 %v596
        %v1170 = vunpack.c.h.b16 %v596
        %v1171 = vunpack.c.l.b16 %v597
        %v1172 = vunpack.c.h.b16 %v597
        %v1173 = vunpack.c.l.b16 %v598
        %v1174 = vunpack.c.h.b16 %v598
        %v1175 = vunpack.c.l.b16 %v599
        %v1176 = vunpack.c.h.b16 %v599
        %v1177 = vunpack.c.l.b16 %v600
        %v1178 = vunpack.c.h.b16 %v600
        %v1179 = vunpack.c.l.b16 %v601
        %v1180 = vunpack.c.h.b16 %v601
        %v1181 = vunpack.c.l.b16 %v602
        %v1182 = vunpack.c.h.b16 %v602
        %v1183 = vunpack.c.l.b16 %v603
        %v1184 = vunpack.c.h.b16 %v603
        %v1185 = vunpack.c.l.b16 %v604
        %v1186 = vunpack.c.h.b16 %v604
        %v1187 = vunpack.c.l.b16 %v605
        %v1188 = vunpack.c.h.b16 %v605
        %v1189 = vunpack.c.l.b16 %v606
        %v1190 = vunpack.c.h.b16 %v606
        %v1191 = vunpack.c.l.b16 %v607
        %v1192 = vunpack.c.h.b16 %v607
        %v1193 = vunpack.c.l.b16 %v608
        %v1194 = vunpack.c.h.b16 %v608
        %v1195 = vunpack.c.l.b16 %v609
        %v1196 = vunpack.c.h.b16 %v609
        %v1197 = vunpack.c.l.b16 %v610
        %v1198 = vunpack.c.h.b16 %v610
        %v1199 = vunpack.c.l.b16 %v611
        %v1200 = vunpack.c.h.b16 %v611
        %v1201 = vunpack.c.l.b16 %v612
        %v1202 = vunpack.c.h.b16 %v612
        %v1203 = vunpack.c.l.b16 %v613
        %v1204 = vunpack.c.h.b16 %v613
        %v1205 = vunpack.c.l.b16 %v614
        %v1206 = vunpack.c.h.b16 %v614
        %v1207 = vunpack.c.l.b16 %v615
        %v1208 = vunpack.c.h.b16 %v615
        %v1209 = vunpack.c.l.b16 %v616
        %v1210 = vunpack.c.h.b16 %v616
        %v1211 = vunpack.c.l.b16 %v617
        %v1212 = vunpack.c.h.b16 %v617
        %v1213 = vunpack.c.l.b16 %v618
        %v1214 = vunpack.c.h.b16 %v618
        %v1215 = vunpack.c.l.b16 %v619
        %v1216 = vunpack.c.h.b16 %v619
        %v1217 = vunpack.c.l.b16 %v620
        %v1218 = vunpack.c.h.b16 %v620
        %v1219 = vunpack.c.l.b16 %v621
        %v1220 = vunpack.c.h.b16 %v621
        %v1221 = vunpack.c.l.b16 %v622
        %v1222 = vunpack.c.h.b16 %v622
        %v1223 = vunpack.c.l.b16 %v623
        %v1224 = vunpack.c.h.b16 %v623
        %v1225 = vunpack.c.l.b16 %v624
        %v1226 = vunpack.c.h.b16 %v624
        %v1227 = vunpack.c.l.b16 %v625
        %v1228 = vunpack.c.h.b16 %v625
        %v1229 = vunpack.c.l.b16 %v626
        %v1230 = vunpack.c.h.b16 %v626
        %v1231 = vunpack.c.l.b16 %v627
        %v1232 = vunpack.c.h.b16 %v627
        %v1233 = vunpack.c.l.b16 %v628
        %v1234 = vunpack.c.h.b16 %v628
        %v1235 = vunpack.c.l.b16 %v629
        %v1236 = vunpack.c.h.b16 %v629
        %v1237 = vunpack.c.l.b16 %v630
        %v1238 = vunpack.c.h.b16 %v630
        %v1239 = vunpack.c.l.b16 %v631
        %v1240 = vunpack.c.h.b16 %v631
        %v1241 = vunpack.c.l.b16 %v632
        %v1242 = vunpack.c.h.b16 %v632
        %v1243 = vpack.c.b16 %v855, %v851
        %v1244 = vpack.c.b16 %v856, %v852
        %v1245 = vpack.c.b16 %v857, %v853
        %v1246 = vpack.c.b16 %v858, %v854
        %v1247 = vpack.c.b16 %v863, %v859
        %v1248 = vpack.c.b16 %v864, %v860
        %v1249 = vpack.c.b16 %v865, %v861
        %v1250 = vpack.c.b16 %v866, %v862
        %v1251 = vpack.c.b16 %v871, %v867
        %v1252 = vpack.c.b16 %v872, %v868
        %v1253 = vpack.c.b16 %v873, %v869
        %v1254 = vpack.c.b16 %v874, %v870
        %v1255 = vpack.c.b16 %v879, %v875
        %v1256 = vpack.c.b16 %v880, %v876
        %v1257 = vpack.c.b16 %v881, %v877
        %v1258 = vpack.c.b16 %v882, %v878
        %v1259 = vpack.c.b16 %v887, %v883
        %v1260 = vpack.c.b16 %v888, %v884
        %v1261 = vpack.c.b16 %v889, %v885
        %v1262 = vpack.c.b16 %v890, %v886
        %v1263 = vpack.c.b16 %v895, %v891
        %v1264 = vpack.c.b16 %v896, %v892
        %v1265 = vpack.c.b16 %v897, %v893
        %v1266 = vpack.c.b16 %v898, %v894
        %v1267 = vpack.c.b16 %v903, %v899
        %v1268 = vpack.c.b16 %v904, %v900
        %v1269 = vpack.c.b16 %v905, %v901
        %v1270 = vpack.c.b16 %v906, %v902
        %v1271 = vpack.c.b16 %v911, %v907
        %v1272 = vpack.c.b16 %v912, %v908
        %v1273 = vpack.c.b16 %v913, %v909
        %v1274 = vpack.c.b16 %v914, %v910
        %v1275 = vpack.c.b16 %v919, %v915
        %v1276 = vpack.c.b16 %v920, %v916
        %v1277 = vpack.c.b16 %v921, %v917
        %v1278 = vpack.c.b16 %v922, %v918
        %v1279 = vpack.c.b16 %v927, %v923
        %v1280 = vpack.c.b16 %v928, %v924
        %v1281 = vpack.c.b16 %v929, %v925
        %v1282 = vpack.c.b16 %v930, %v926
        %v1283 = vpack.c.b16 %v935, %v931
        %v1284 = vpack.c.b16 %v936, %v932
        %v1285 = vpack.c.b16 %v937, %v933
        %v1286 = vpack.c.b16 %v938, %v934
        %v1287 = vpack.c.b16 %v943, %v939
        %v1288 = vpack.c.b16 %v944, %v940
        %v1289 = vpack.c.b16 %v945, %v941
        %v1290 = vpack.c.b16 %v946, %v942
        %v1291 = vpack.c.b16 %v951, %v947
        %v1292 = vpack.c.b16 %v952, %v948
        %v1293 = vpack.c.b16 %v953, %v949
        %v1294 = vpack.c.b16 %v954, %v950
        %v1295 = vpack.c.b16 %v959, %v955
        %v1296 = vpack.c.b16 %v960, %v956
        %v1297 = vpack.c.b16 %v961, %v957
        %v1298 = vpack.c.b16 %v962, %v958
        %v1299 = vpack.c.b16 %v967, %v963
        %v1300 = vpack.c.b16 %v968, %v964
        %v1301 = vpack.c.b16 %v969, %v965
        %v1302 = vpack.c.b16 %v970, %v966
        %v1303 = vpack.c.b16 %v975, %v971
        %v1304 = vpack.c.b16 %v976, %v972
        %v1305 = vpack.c.b16 %v977, %v973
        %v1306 = vpack.c.b16 %v978, %v974
        %v1307 = vpack.c.b16 %v983, %v979
        %v1308 = vpack.c.b16 %v984, %v980
        %v1309 = vpack.c.b16 %v985, %v981
        %v1310 = vpack.c.b16 %v986, %v982
        %v1311 = vpack.c.b16 %v991, %v987
        %v1312 = vpack.c.b16 %v992, %v988
        %v1313 = vpack.c.b16 %v993, %v989
        %v1314 = vpack.c.b16 %v994, %v990
        %v1315 = vpack.c.b16 %v999, %v995
        %v1316 = vpack.c.b16 %v1000, %v996
        %v1317 = vpack.c.b16 %v1001, %v997
        %v1318 = vpack.c.b16 %v1002, %v998
        %v1319 = vpack.c.b16 %v1007, %v1003
        %v1320 = vpack.c.b16 %v1008, %v1004
        %v1321 = vpack.c.b16 %v1009, %v1005
        %v1322 = vpack.c.b16 %v1010, %v1006
        %v1323 = vpack.c.b16 %v1015, %v1011
        %v1324 = vpack.c.b16 %v1016, %v1012
        %v1325 = vpack.c.b16 %v1017, %v1013
        %v1326 = vpack.c.b16 %v1018, %v1014
        %v1327 = vpack.c.b16 %v1023, %v1019
        %v1328 = vpack.c.b16 %v1024, %v1020
        %v1329 = vpack.c.b16 %v1025, %v1021
        %v1330 = vpack.c.b16 %v1026, %v1022
        %v1331 = vpack.c.b16 %v1031, %v1027
        %v1332 = vpack.c.b16 %v1032, %v1028
        %v1333 = vpack.c.b16 %v1033, %v1029
        %v1334 = vpack.c.b16 %v1034, %v1030
        %v1335 = vpack.c.b16 %v1039, %v1035
        %v1336 = vpack.c.b16 %v1040, %v1036
        %v1337 = vpack.c.b16 %v1041, %v1037
        %v1338 = vpack.c.b16 %v1042, %v1038
        %v1339 = vpack.c.b16 %v1047, %v1043
        %v1340 = vpack.c.b16 %v1048, %v1044
        %v1341 = vpack.c.b16 %v1049, %v1045
        %v1342 = vpack.c.b16 %v1050, %v1046
        %v1343 = vpack.c.b16 %v1055, %v1051
        %v1344 = vpack.c.b16 %v1056, %v1052
        %v1345 = vpack.c.b16 %v1057, %v1053
        %v1346 = vpack.c.b16 %v1058, %v1054
        %v1347 = vpack.c.b16 %v1063, %v1059
        %v1348 = vpack.c.b16 %v1064, %v1060
        %v1349 = vpack.c.b16 %v1065, %v1061
        %v1350 = vpack.c.b16 %v1066, %v1062
        %v1351 = vpack.c.b16 %v1071, %v1067
        %v1352 = vpack.c.b16 %v1072, %v1068
        %v1353 = vpack.c.b16 %v1073, %v1069
        %v1354 = vpack.c.b16 %v1074, %v1070
        %v1355 = vpack.c.b16 %v1079, %v1075
        %v1356 = vpack.c.b16 %v1080, %v1076
        %v1357 = vpack.c.b16 %v1081, %v1077
        %v1358 = vpack.c.b16 %v1082, %v1078
        %v1359 = vpack.c.b16 %v1087, %v1083
        %v1360 = vpack.c.b16 %v1088, %v1084
        %v1361 = vpack.c.b16 %v1089, %v1085
        %v1362 = vpack.c.b16 %v1090, %v1086
        %v1363 = vpack.c.b16 %v1095, %v1091
        %v1364 = vpack.c.b16 %v1096, %v1092
        %v1365 = vpack.c.b16 %v1097, %v1093
        %v1366 = vpack.c.b16 %v1098, %v1094
        %v1367 = vpack.c.b16 %v1103, %v1099
        %v1368 = vpack.c.b16 %v1104, %v1100
        %v1369 = vpack.c.b16 %v1105, %v1101
        %v1370 = vpack.c.b16 %v1106, %v1102
        %v1371 = vpack.c.b16 %v1111, %v1107
        %v1372 = vpack.c.b16 %v1112, %v1108
        %v1373 = vpack.c.b16 %v1113, %v1109
        %v1374 = vpack.c.b16 %v1114, %v1110
        %v1375 = vpack.c.b16 %v1119, %v1115
        %v1376 = vpack.c.b16 %v1120, %v1116
        %v1377 = vpack.c.b16 %v1121, %v1117
        %v1378 = vpack.c.b16 %v1122, %v1118
        %v1379 = vpack.c.b16 %v1127, %v1123
        %v1380 = vpack.c.b16 %v1128, %v1124
        %v1381 = vpack.c.b16 %v1129, %v1125
        %v1382 = vpack.c.b16 %v1130, %v1126
        %v1383 = vpack.c.b16 %v1135, %v1131
        %v1384 = vpack.c.b16 %v1136, %v1132
        %v1385 = vpack.c.b16 %v1137, %v1133
        %v1386 = vpack.c.b16 %v1138, %v1134
        %v1387 = vpack.c.b16 %v1143, %v1139
        %v1388 = vpack.c.b16 %v1144, %v1140
        %v1389 = vpack.c.b16 %v1145, %v1141
        %v1390 = vpack.c.b16 %v1146, %v1142
        %v1391 = vpack.c.b16 %v1151, %v1147
        %v1392 = vpack.c.b16 %v1152, %v1148
        %v1393 = vpack.c.b16 %v1153, %v1149
        %v1394 = vpack.c.b16 %v1154, %v1150
        %v1395 = vpack.c.b16 %v1159, %v1155
        %v1396 = vpack.c.b16 %v1160, %v1156
        %v1397 = vpack.c.b16 %v1161, %v1157
        %v1398 = vpack.c.b16 %v1162, %v1158
        %v1399 = vpack.c.b16 %v1167, %v1163
        %v1400 = vpack.c.b16 %v1168, %v1164
        %v1401 = vpack.c.b16 %v1169, %v1165
        %v1402 = vpack.c.b16 %v1170, %v1166
        %v1403 = vpack.c.b16 %v1175, %v1171
        %v1404 = vpack.c.b16 %v1176, %v1172
        %v1405 = vpack.c.b16 %v1177, %v1173
        %v1406 = vpack.c.b16 %v1178, %v1174
        %v1407 = vpack.c.b16 %v1183, %v1179
        %v1408 = vpack.c.b16 %v1184, %v1180
        %v1409 = vpack.c.b16 %v1185, %v1181
        %v1410 = vpack.c.b16 %v1186, %v1182
        %v1411 = vpack.c.b16 %v1191, %v1187
        %v1412 = vpack.c.b16 %v1192, %v1188
        %v1413 = vpack.c.b16 %v1193, %v1189
        %v1414 = vpack.c.b16 %v1194, %v1190
        %v1415 = vpack.c.b16 %v1199, %v1195
        %v1416 = vpack.c.b16 %v1200, %v1196
        %v1417 = vpack.c.b16 %v1201, %v1197
        %v1418 = vpack.c.b16 %v1202, %v1198
        %v1419 = vpack.c.b16 %v1207, %v1203
        %v1420 = vpack.c.b16 %v1208, %v1204
        %v1421 = vpack.c.b16 %v1209, %v1205
        %v1422 = vpack.c.b16 %v1210, %v1206
        %v1423 = vpack.c.b16 %v1215, %v1211
        %v1424 = vpack.c.b16 %v1216, %v1212
        %v1425 = vpack.c.b16 %v1217, %v1213
        %v1426 = vpack.c.b16 %v1218, %v1214
        %v1427 = vpack.c.b16 %v1223, %v1219
        %v1428 = vpack.c.b16 %v1224, %v1220
        %v1429 = vpack.c.b16 %v1225, %v1221
        %v1430 = vpack.c.b16 %v1226, %v1222
        %v1431 = vpack.c.b16 %v1231, %v1227
        %v1432 = vpack.c.b16 %v1232, %v1228
        %v1433 = vpack.c.b16 %v1233, %v1229
        %v1434 = vpack.c.b16 %v1234, %v1230
        %v1435 = vpack.c.b16 %v1239, %v1235
        %v1436 = vpack.c.b16 %v1240, %v1236
        %v1437 = vpack.c.b16 %v1241, %v1237
        %v1438 = vpack.c.b16 %v1242, %v1238
        %vm1635 = vcmask 130048
        %v1637 = vsel %vm1635, %v408, 0
        %v1640 = vsel %vm1635, %v415, 0
        %v1643 = vsel %vm1635, %v422, 0
        %v1646 = vsel %vm1635, %v429, 0
        %v1649 = vsel %vm1635, %v436, 0
        %1651 = vmatprep.subr.bf16.mxu0 %v1244
        %1652 = vmatpush1.bf16.msra.mxu0 %v1243
        %1653 = vmatprep.subr.bf16.mxu0 %v1248
        %1654 = vmatpush1.bf16.msra.mxu0 %v1247
        %1655 = vmatprep.subr.bf16.mxu0 %v1252
        %1656 = vmatpush1.bf16.msra.mxu0 %v1251
        %1657 = vmatprep.subr.bf16.mxu0 %v1256
        %1658 = vmatpush1.bf16.msra.mxu0 %v1255
        %1659 = vmatprep.subr.bf16.mxu0 %v1260
        %1660 = vmatpush1.bf16.msra.mxu0 %v1259
        %1661 = vmatprep.subr.bf16.mxu0 %v1264
        %1662 = vmatpush1.bf16.msra.mxu0 %v1263
        %1663 = vmatprep.subr.bf16.mxu0 %v1268
        %1664 = vmatpush1.bf16.msra.mxu0 %v1267
        %1665 = vmatprep.subr.bf16.mxu0 %v1272
        %1666 = vmatpush1.bf16.msra.mxu0 %v1271
        %1667 = vmatprep.subr.bf16.mxu0 %v1276
        %1668 = vmatpush1.bf16.msra.mxu0 %v1275
        %1669 = vmatprep.subr.bf16.mxu0 %v1280
        %1670 = vmatpush1.bf16.msra.mxu0 %v1279
        %1671 = vmatprep.subr.bf16.mxu0 %v1284
        %1672 = vmatpush1.bf16.msra.mxu0 %v1283
        %1673 = vmatprep.subr.bf16.mxu0 %v1288
        %1674 = vmatpush1.bf16.msra.mxu0 %v1287
        %1675 = vmatprep.subr.bf16.mxu0 %v1292
        %1676 = vmatpush1.bf16.msra.mxu0 %v1291
        %1677 = vmatprep.subr.bf16.mxu0 %v1296
        %1678 = vmatpush1.bf16.msra.mxu0 %v1295
        %1679 = vmatprep.subr.bf16.mxu0 %v1300
        %1680 = vmatpush1.bf16.msra.mxu0 %v1299
        %1681 = vmatprep.subr.bf16.mxu0 %v1304
        %1682 = vmatpush1.bf16.msra.mxu0 %v1303
        %1683 = vmatprep.mubr.bf16.mxu0 %v403
        %1684 = vmatmul.mubr.bf16.gmra.mrb[0].mxu0 %v402
        %v1685 = vpop.f32.mrb[0].mxu0
        %v1686 = vadd.f32 %v638, %v1685
        %v1687 = vpop.f32.mrb[0].mxu0
        %v1688 = vadd.f32 %v642, %v1687
        %v1689 = vpop.f32.mrb[0].mxu0
        %v1690 = vadd.f32 %v638, %v1689
        %v1691 = vpop.f32.mrb[0].mxu0
        %v1692 = vadd.f32 %v642, %v1691
        %1693 = vmatprep.mubr.bf16.mxu0 %v410
        %1694 = vmatmul.mubr.bf16.gmra.mrb[0].mxu0 %v409
        %v1695 = vpop.f32.mrb[0].mxu0
        %v1696 = vadd.f32 %v638, %v1695
        %v1697 = vpop.f32.mrb[0].mxu0
        %v1698 = vadd.f32 %v642, %v1697
        %v1699 = vpop.f32.mrb[0].mxu0
        %v1700 = vadd.f32 %v638, %v1699
        %v1701 = vpop.f32.mrb[0].mxu0
        %v1702 = vadd.f32 %v642, %v1701
        %1703 = vmatprep.mubr.bf16.mxu0 %v417
        %1704 = vmatmul.mubr.bf16.gmra.mrb[0].mxu0 %v416
        %v1705 = vpop.f32.mrb[0].mxu0
        %v1706 = vadd.f32 %v638, %v1705
        %v1707 = vpop.f32.mrb[0].mxu0
        %v1708 = vadd.f32 %v642, %v1707
        %v1709 = vpop.f32.mrb[0].mxu0
        %v1710 = vadd.f32 %v638, %v1709
        %v1711 = vpop.f32.mrb[0].mxu0
        %v1712 = vadd.f32 %v642, %v1711
        %1713 = vmatprep.mubr.bf16.mxu0 %v424
        %1714 = vmatmul.mubr.bf16.gmra.mrb[0].mxu0 %v423
        %v1715 = vpop.f32.mrb[0].mxu0
        %v1716 = vadd.f32 %v638, %v1715
        %v1717 = vpop.f32.mrb[0].mxu0
        %v1718 = vadd.f32 %v642, %v1717
        %v1719 = vpop.f32.mrb[0].mxu0
        %v1720 = vadd.f32 %v638, %v1719
        %v1721 = vpop.f32.mrb[0].mxu0
        %v1722 = vadd.f32 %v642, %v1721
        %1723 = vmatprep.mubr.bf16.mxu0 %v431
        %1724 = vmatmul.mubr.bf16.gmra.mrb[0].mxu0 %v430
        %v1725 = vpop.f32.mrb[0].mxu0
        %v1726 = vadd.f32 %v638, %v1725
        %v1727 = vpop.f32.mrb[0].mxu0
        %v1728 = vadd.f32 %v642, %v1727
        %v1729 = vpop.f32.mrb[0].mxu0
        %v1730 = vadd.f32 %v638, %v1729
        %v1731 = vpop.f32.mrb[0].mxu0
        %v1732 = vadd.f32 %v642, %v1731
        %1733 = vdwg.mxu0
        %1734 = vmatprep.subr.bf16.mxu0 %v1308
        %1735 = vmatpush1.bf16.msra.mxu0 %v1307
        %1736 = vmatprep.subr.bf16.mxu0 %v1312
        %1737 = vmatpush1.bf16.msra.mxu0 %v1311
        %1738 = vmatprep.subr.bf16.mxu0 %v1316
        %1739 = vmatpush1.bf16.msra.mxu0 %v1315
        %1740 = vmatprep.subr.bf16.mxu0 %v1320
        %1741 = vmatpush1.bf16.msra.mxu0 %v1319
        %1742 = vmatprep.subr.bf16.mxu0 %v1324
        %1743 = vmatpush1.bf16.msra.mxu0 %v1323
        %1744 = vmatprep.subr.bf16.mxu0 %v1328
        %1745 = vmatpush1.bf16.msra.mxu0 %v1327
        %1746 = vmatprep.subr.bf16.mxu0 %v1332
        %1747 = vmatpush1.bf16.msra.mxu0 %v1331
        %1748 = vmatprep.subr.bf16.mxu0 %v1336
        %1749 = vmatpush1.bf16.msra.mxu0 %v1335
        %1750 = vmatprep.subr.bf16.mxu0 %v1340
        %1751 = vmatpush1.bf16.msra.mxu0 %v1339
        %1752 = vmatprep.subr.bf16.mxu0 %v1344
        %1753 = vmatpush1.bf16.msra.mxu0 %v1343
        %1754 = vmatprep.subr.bf16.mxu0 %v1348
        %1755 = vmatpush1.bf16.msra.mxu0 %v1347
        %1756 = vmatprep.subr.bf16.mxu0 %v1352
        %1757 = vmatpush1.bf16.msra.mxu0 %v1351
        %1758 = vmatprep.subr.bf16.mxu0 %v1356
        %1759 = vmatpush1.bf16.msra.mxu0 %v1355
        %1760 = vmatprep.subr.bf16.mxu0 %v1360
        %1761 = vmatpush1.bf16.msra.mxu0 %v1359
        %1762 = vmatprep.subr.bf16.mxu0 %v1364
        %1763 = vmatpush1.bf16.msra.mxu0 %v1363
        %1764 = vmatprep.subr.bf16.mxu0 %v1368
        %1765 = vmatpush1.bf16.msra.mxu0 %v1367
        %1766 = vmatprep.mubr.bf16.mxu0 %v405
        %1767 = vmatmul.mubr.bf16.gmra.mrb[0].mxu0 %v404
        %v1768 = vpop.f32.mrb[0].mxu0
        %v1769 = vadd.f32 %v1686, %v1768
        %v1770 = vpop.f32.mrb[0].mxu0
        %v1771 = vadd.f32 %v1688, %v1770
        %v1772 = vpop.f32.mrb[0].mxu0
        %v1773 = vadd.f32 %v1690, %v1772
        %v1774 = vpop.f32.mrb[0].mxu0
        %v1775 = vadd.f32 %v1692, %v1774
        %1776 = vmatprep.mubr.bf16.mxu0 %v412
        %1777 = vmatmul.mubr.bf16.gmra.mrb[0].mxu0 %v411
        %v1778 = vpop.f32.mrb[0].mxu0
        %v1779 = vadd.f32 %v1696, %v1778
        %v1780 = vpop.f32.mrb[0].mxu0
        %v1781 = vadd.f32 %v1698, %v1780
        %v1782 = vpop.f32.mrb[0].mxu0
        %v1783 = vadd.f32 %v1700, %v1782
        %v1784 = vpop.f32.mrb[0].mxu0
        %v1785 = vadd.f32 %v1702, %v1784
        %1786 = vmatprep.mubr.bf16.mxu0 %v419
        %1787 = vmatmul.mubr.bf16.gmra.mrb[0].mxu0 %v418
        %v1788 = vpop.f32.mrb[0].mxu0
        %v1789 = vadd.f32 %v1706, %v1788
        %v1790 = vpop.f32.mrb[0].mxu0
        %v1791 = vadd.f32 %v1708, %v1790
        %v1792 = vpop.f32.mrb[0].mxu0
        %v1793 = vadd.f32 %v1710, %v1792
        %v1794 = vpop.f32.mrb[0].mxu0
        %v1795 = vadd.f32 %v1712, %v1794
        %1796 = vmatprep.mubr.bf16.mxu0 %v426
        %1797 = vmatmul.mubr.bf16.gmra.mrb[0].mxu0 %v425
        %v1798 = vpop.f32.mrb[0].mxu0
        %v1799 = vadd.f32 %v1716, %v1798
        %v1800 = vpop.f32.mrb[0].mxu0
        %v1801 = vadd.f32 %v1718, %v1800
        %v1802 = vpop.f32.mrb[0].mxu0
        %v1803 = vadd.f32 %v1720, %v1802
        %v1804 = vpop.f32.mrb[0].mxu0
        %v1805 = vadd.f32 %v1722, %v1804
        %1806 = vmatprep.mubr.bf16.mxu0 %v433
        %1807 = vmatmul.mubr.bf16.gmra.mrb[0].mxu0 %v432
        %v1808 = vpop.f32.mrb[0].mxu0
        %v1809 = vadd.f32 %v1726, %v1808
        %v1810 = vpop.f32.mrb[0].mxu0
        %v1811 = vadd.f32 %v1728, %v1810
        %v1812 = vpop.f32.mrb[0].mxu0
        %v1813 = vadd.f32 %v1730, %v1812
        %v1814 = vpop.f32.mrb[0].mxu0
        %v1815 = vadd.f32 %v1732, %v1814
        %1816 = vdwg.mxu0
        %1817 = vmatprep.subr.bf16.mxu0 %v1372
        %1818 = vmatpush1.bf16.msra.mxu0 %v1371
        %1819 = vmatprep.subr.bf16.mxu0 %v1376
        %1820 = vmatpush1.bf16.msra.mxu0 %v1375
        %1821 = vmatprep.subr.bf16.mxu0 %v1380
        %1822 = vmatpush1.bf16.msra.mxu0 %v1379
        %1823 = vmatprep.subr.bf16.mxu0 %v1384
        %1824 = vmatpush1.bf16.msra.mxu0 %v1383
        %1825 = vmatprep.subr.bf16.mxu0 %v1388
        %1826 = vmatpush1.bf16.msra.mxu0 %v1387
        %1827 = vmatprep.subr.bf16.mxu0 %v1392
        %1828 = vmatpush1.bf16.msra.mxu0 %v1391
        %1829 = vmatprep.subr.bf16.mxu0 %v1396
        %1830 = vmatpush1.bf16.msra.mxu0 %v1395
        %1831 = vmatprep.subr.bf16.mxu0 %v1400
        %1832 = vmatpush1.bf16.msra.mxu0 %v1399
        %1833 = vmatprep.subr.bf16.mxu0 %v1404
        %1834 = vmatpush1.bf16.msra.mxu0 %v1403
        %1835 = vmatprep.subr.bf16.mxu0 %v1408
        %1836 = vmatpush1.bf16.msra.mxu0 %v1407
        %1837 = vmatprep.subr.bf16.mxu0 %v1412
        %1838 = vmatpush1.bf16.msra.mxu0 %v1411
        %1839 = vmatprep.subr.bf16.mxu0 %v1416
        %1840 = vmatpush1.bf16.msra.mxu0 %v1415
        %1841 = vmatprep.subr.bf16.mxu0 %v1420
        %1842 = vmatpush1.bf16.msra.mxu0 %v1419
        %1843 = vmatprep.subr.bf16.mxu0 %v1424
        %1844 = vmatpush1.bf16.msra.mxu0 %v1423
        %1845 = vmatprep.subr.bf16.mxu0 %v1428
        %1846 = vmatpush1.bf16.msra.mxu0 %v1427
        %1847 = vmatprep.subr.bf16.mxu0 %v1432
        %1848 = vmatpush1.bf16.msra.mxu0 %v1431
        %1849 = vmatprep.mubr.bf16.mxu0 %v407
        %1850 = vmatmul.mubr.bf16.gmra.mrb[0].mxu0 %v406
        %v1851 = vpop.f32.mrb[0].mxu0
        %v1852 = vadd.f32 %v1769, %v1851
        %v1853 = vpop.f32.mrb[0].mxu0
        %v1854 = vadd.f32 %v1771, %v1853
        %v1855 = vpop.f32.mrb[0].mxu0
        %v1856 = vadd.f32 %v1773, %v1855
        %v1857 = vpop.f32.mrb[0].mxu0
        %v1858 = vadd.f32 %v1775, %v1857
        %1859 = vmatprep.mubr.bf16.mxu0 %v414
        %1860 = vmatmul.mubr.bf16.gmra.mrb[0].mxu0 %v413
        %v1861 = vpop.f32.mrb[0].mxu0
        %v1862 = vadd.f32 %v1779, %v1861
        %v1863 = vpop.f32.mrb[0].mxu0
        %v1864 = vadd.f32 %v1781, %v1863
        %v1865 = vpop.f32.mrb[0].mxu0
        %v1866 = vadd.f32 %v1783, %v1865
        %v1867 = vpop.f32.mrb[0].mxu0
        %v1868 = vadd.f32 %v1785, %v1867
        %1869 = vmatprep.mubr.bf16.mxu0 %v421
        %1870 = vmatmul.mubr.bf16.gmra.mrb[0].mxu0 %v420
        %v1871 = vpop.f32.mrb[0].mxu0
        %v1872 = vadd.f32 %v1789, %v1871
        %v1873 = vpop.f32.mrb[0].mxu0
        %v1874 = vadd.f32 %v1791, %v1873
        %v1875 = vpop.f32.mrb[0].mxu0
        %v1876 = vadd.f32 %v1793, %v1875
        %v1877 = vpop.f32.mrb[0].mxu0
        %v1878 = vadd.f32 %v1795, %v1877
        %1879 = vmatprep.mubr.bf16.mxu0 %v428
        %1880 = vmatmul.mubr.bf16.gmra.mrb[0].mxu0 %v427
        %v1881 = vpop.f32.mrb[0].mxu0
        %v1882 = vadd.f32 %v1799, %v1881
        %v1883 = vpop.f32.mrb[0].mxu0
        %v1884 = vadd.f32 %v1801, %v1883
        %v1885 = vpop.f32.mrb[0].mxu0
        %v1886 = vadd.f32 %v1803, %v1885
        %v1887 = vpop.f32.mrb[0].mxu0
        %v1888 = vadd.f32 %v1805, %v1887
        %1889 = vmatprep.mubr.bf16.mxu0 %v435
        %1890 = vmatmul.mubr.bf16.gmra.mrb[0].mxu0 %v434
        %v1891 = vpop.f32.mrb[0].mxu0
        %v1892 = vadd.f32 %v1809, %v1891
        %v1893 = vpop.f32.mrb[0].mxu0
        %v1894 = vadd.f32 %v1811, %v1893
        %v1895 = vpop.f32.mrb[0].mxu0
        %v1896 = vadd.f32 %v1813, %v1895
        %v1897 = vpop.f32.mrb[0].mxu0
        %v1898 = vadd.f32 %v1815, %v1897
        %1899 = vdwg.mxu0
        %1900 = vmatprep.subr.bf16.mxu0 %v1436
        %1901 = vmatpush1.bf16.msra.mxu0 %v1435
        %1902 = vmatprep.subr.bf16.mxu0 0
        %1903 = vmatpush1.bf16.msra.mxu0 0
        %1904 = vmatprep.subr.bf16.mxu0 0
        %1905 = vmatpush1.bf16.msra.mxu0 0
        %1906 = vmatprep.subr.bf16.mxu0 0
        %1907 = vmatpush1.bf16.msra.mxu0 0
        %1908 = vmatprep.subr.bf16.mxu0 0
        %1909 = vmatpush1.bf16.msra.mxu0 0
        %1910 = vmatprep.subr.bf16.mxu0 0
        %1911 = vmatpush1.bf16.msra.mxu0 0
        %1912 = vmatprep.subr.bf16.mxu0 0
        %1913 = vmatpush1.bf16.msra.mxu0 0
        %1914 = vmatprep.subr.bf16.mxu0 0
        %1915 = vmatpush1.bf16.msra.mxu0 0
        %1916 = vmatprep.subr.bf16.mxu0 0
        %1917 = vmatpush1.bf16.msra.mxu0 0
        %1918 = vmatprep.subr.bf16.mxu0 0
        %1919 = vmatpush1.bf16.msra.mxu0 0
        %1920 = vmatprep.subr.bf16.mxu0 0
        %1921 = vmatpush1.bf16.msra.mxu0 0
        %1922 = vmatprep.subr.bf16.mxu0 0
        %1923 = vmatpush1.bf16.msra.mxu0 0
        %1924 = vmatprep.subr.bf16.mxu0 0
        %1925 = vmatpush1.bf16.msra.mxu0 0
        %1926 = vmatprep.subr.bf16.mxu0 0
        %1927 = vmatpush1.bf16.msra.mxu0 0
        %1928 = vmatprep.subr.bf16.mxu0 0
        %1929 = vmatpush1.bf16.msra.mxu0 0
        %1930 = vmatprep.subr.bf16.mxu0 0
        %1931 = vmatpush1.bf16.msra.mxu0 0
        %1932 = vmatprep.mubr.bf16.mxu0 0
        %1933 = vmatmul.mubr.bf16.gmra.mrb[0].mxu0 %v1637
        %v1934 = vpop.f32.mrb[0].mxu0
        %v1935 = vadd.f32 %v1852, %v1934
        %v1936 = vpop.f32.mrb[0].mxu0
        %v1937 = vadd.f32 %v1854, %v1936
        %v1938 = vpop.f32.mrb[0].mxu0
        %v1939 = vadd.f32 %v1856, %v1938
        %v1940 = vpop.f32.mrb[0].mxu0
        %v1941 = vadd.f32 %v1858, %v1940
        %1942 = vmatprep.mubr.bf16.mxu0 0
        %1943 = vmatmul.mubr.bf16.gmra.mrb[0].mxu0 %v1640
        %v1944 = vpop.f32.mrb[0].mxu0
        %v1945 = vadd.f32 %v1862, %v1944
        %v1946 = vpop.f32.mrb[0].mxu0
        %v1947 = vadd.f32 %v1864, %v1946
        %v1948 = vpop.f32.mrb[0].mxu0
        %v1949 = vadd.f32 %v1866, %v1948
        %v1950 = vpop.f32.mrb[0].mxu0
        %v1951 = vadd.f32 %v1868, %v1950
        %1952 = vmatprep.mubr.bf16.mxu0 0
        %1953 = vmatmul.mubr.bf16.gmra.mrb[0].mxu0 %v1643
        %v1954 = vpop.f32.mrb[0].mxu0
        %v1955 = vadd.f32 %v1872, %v1954
        %v1956 = vpop.f32.mrb[0].mxu0
        %v1957 = vadd.f32 %v1874, %v1956
        %v1958 = vpop.f32.mrb[0].mxu0
        %v1959 = vadd.f32 %v1876, %v1958
        %v1960 = vpop.f32.mrb[0].mxu0
        %v1961 = vadd.f32 %v1878, %v1960
        %1962 = vmatprep.mubr.bf16.mxu0 0
        %1963 = vmatmul.mubr.bf16.gmra.mrb[0].mxu0 %v1646
        %v1964 = vpop.f32.mrb[0].mxu0
        %v1965 = vadd.f32 %v1882, %v1964
        %v1966 = vpop.f32.mrb[0].mxu0
        %v1967 = vadd.f32 %v1884, %v1966
        %v1968 = vpop.f32.mrb[0].mxu0
        %v1969 = vadd.f32 %v1886, %v1968
        %v1970 = vpop.f32.mrb[0].mxu0
        %v1971 = vadd.f32 %v1888, %v1970
        %1972 = vmatprep.mubr.bf16.mxu0 0
        %1973 = vmatmul.mubr.bf16.gmra.mrb[0].mxu0 %v1649
        %v1974 = vpop.f32.mrb[0].mxu0
        %v1975 = vadd.f32 %v1892, %v1974
        %v1976 = vpop.f32.mrb[0].mxu0
        %v1977 = vadd.f32 %v1894, %v1976
        %v1978 = vpop.f32.mrb[0].mxu0
        %v1979 = vadd.f32 %v1896, %v1978
        %v1980 = vpop.f32.mrb[0].mxu0
        %v1981 = vadd.f32 %v1898, %v1980
        %1982 = vdwg.mxu0
        %1983 = vmatprep.subr.bf16.mxu0 %v1246
        %1984 = vmatpush1.bf16.msra.mxu0 %v1245
        %1985 = vmatprep.subr.bf16.mxu0 %v1250
        %1986 = vmatpush1.bf16.msra.mxu0 %v1249
        %1987 = vmatprep.subr.bf16.mxu0 %v1254
        %1988 = vmatpush1.bf16.msra.mxu0 %v1253
        %1989 = vmatprep.subr.bf16.mxu0 %v1258
        %1990 = vmatpush1.bf16.msra.mxu0 %v1257
        %1991 = vmatprep.subr.bf16.mxu0 %v1262
        %1992 = vmatpush1.bf16.msra.mxu0 %v1261
        %1993 = vmatprep.subr.bf16.mxu0 %v1266
        %1994 = vmatpush1.bf16.msra.mxu0 %v1265
        %1995 = vmatprep.subr.bf16.mxu0 %v1270
        %1996 = vmatpush1.bf16.msra.mxu0 %v1269
        %1997 = vmatprep.subr.bf16.mxu0 %v1274
        %1998 = vmatpush1.bf16.msra.mxu0 %v1273
        %1999 = vmatprep.subr.bf16.mxu0 %v1278
        %2000 = vmatpush1.bf16.msra.mxu0 %v1277
        %2001 = vmatprep.subr.bf16.mxu0 %v1282
        %2002 = vmatpush1.bf16.msra.mxu0 %v1281
        %2003 = vmatprep.subr.bf16.mxu0 %v1286
        %2004 = vmatpush1.bf16.msra.mxu0 %v1285
        %2005 = vmatprep.subr.bf16.mxu0 %v1290
        %2006 = vmatpush1.bf16.msra.mxu0 %v1289
        %2007 = vmatprep.subr.bf16.mxu0 %v1294
        %2008 = vmatpush1.bf16.msra.mxu0 %v1293
        %2009 = vmatprep.subr.bf16.mxu0 %v1298
        %2010 = vmatpush1.bf16.msra.mxu0 %v1297
        %2011 = vmatprep.subr.bf16.mxu0 %v1302
        %2012 = vmatpush1.bf16.msra.mxu0 %v1301
        %2013 = vmatprep.subr.bf16.mxu0 %v1306
        %2014 = vmatpush1.bf16.msra.mxu0 %v1305
        %2015 = vmatprep.mubr.bf16.mxu0 %v403
        %2016 = vmatmul.mubr.bf16.gmra.mrb[0].mxu0 %v402
        %v2017 = vpop.f32.mrb[0].mxu0
        %v2018 = vadd.f32 %v646, %v2017
        %v2019 = vpop.f32.mrb[0].mxu0
        %v2020 = vadd.f32 %v650, %v2019
        %v2021 = vpop.f32.mrb[0].mxu0
        %v2022 = vadd.f32 %v646, %v2021
        %v2023 = vpop.f32.mrb[0].mxu0
        %v2024 = vadd.f32 %v650, %v2023
        %2025 = vmatprep.mubr.bf16.mxu0 %v410
        %2026 = vmatmul.mubr.bf16.gmra.mrb[0].mxu0 %v409
        %v2027 = vpop.f32.mrb[0].mxu0
        %v2028 = vadd.f32 %v646, %v2027
        %v2029 = vpop.f32.mrb[0].mxu0
        %v2030 = vadd.f32 %v650, %v2029
        %v2031 = vpop.f32.mrb[0].mxu0
        %v2032 = vadd.f32 %v646, %v2031
        %v2033 = vpop.f32.mrb[0].mxu0
        %v2034 = vadd.f32 %v650, %v2033
        %2035 = vmatprep.mubr.bf16.mxu0 %v417
        %2036 = vmatmul.mubr.bf16.gmra.mrb[0].mxu0 %v416
        %v2037 = vpop.f32.mrb[0].mxu0
        %v2038 = vadd.f32 %v646, %v2037
        %v2039 = vpop.f32.mrb[0].mxu0
        %v2040 = vadd.f32 %v650, %v2039
        %v2041 = vpop.f32.mrb[0].mxu0
        %v2042 = vadd.f32 %v646, %v2041
        %v2043 = vpop.f32.mrb[0].mxu0
        %v2044 = vadd.f32 %v650, %v2043
        %2045 = vmatprep.mubr.bf16.mxu0 %v424
        %2046 = vmatmul.mubr.bf16.gmra.mrb[0].mxu0 %v423
        %v2047 = vpop.f32.mrb[0].mxu0
        %v2048 = vadd.f32 %v646, %v2047
        %v2049 = vpop.f32.mrb[0].mxu0
        %v2050 = vadd.f32 %v650, %v2049
        %v2051 = vpop.f32.mrb[0].mxu0
        %v2052 = vadd.f32 %v646, %v2051
        %v2053 = vpop.f32.mrb[0].mxu0
        %v2054 = vadd.f32 %v650, %v2053
        %2055 = vmatprep.mubr.bf16.mxu0 %v431
        %2056 = vmatmul.mubr.bf16.gmra.mrb[0].mxu0 %v430
        %v2057 = vpop.f32.mrb[0].mxu0
        %v2058 = vadd.f32 %v646, %v2057
        %v2059 = vpop.f32.mrb[0].mxu0
        %v2060 = vadd.f32 %v650, %v2059
        %v2061 = vpop.f32.mrb[0].mxu0
        %v2062 = vadd.f32 %v646, %v2061
        %v2063 = vpop.f32.mrb[0].mxu0
        %v2064 = vadd.f32 %v650, %v2063
        %2065 = vdwg.mxu0
        %2066 = vmatprep.subr.bf16.mxu0 %v1310
        %2067 = vmatpush1.bf16.msra.mxu0 %v1309
        %2068 = vmatprep.subr.bf16.mxu0 %v1314
        %2069 = vmatpush1.bf16.msra.mxu0 %v1313
        %2070 = vmatprep.subr.bf16.mxu0 %v1318
        %2071 = vmatpush1.bf16.msra.mxu0 %v1317
        %2072 = vmatprep.subr.bf16.mxu0 %v1322
        %2073 = vmatpush1.bf16.msra.mxu0 %v1321
        %2074 = vmatprep.subr.bf16.mxu0 %v1326
        %2075 = vmatpush1.bf16.msra.mxu0 %v1325
        %2076 = vmatprep.subr.bf16.mxu0 %v1330
        %2077 = vmatpush1.bf16.msra.mxu0 %v1329
        %2078 = vmatprep.subr.bf16.mxu0 %v1334
        %2079 = vmatpush1.bf16.msra.mxu0 %v1333
        %2080 = vmatprep.subr.bf16.mxu0 %v1338
        %2081 = vmatpush1.bf16.msra.mxu0 %v1337
        %2082 = vmatprep.subr.bf16.mxu0 %v1342
        %2083 = vmatpush1.bf16.msra.mxu0 %v1341
        %2084 = vmatprep.subr.bf16.mxu0 %v1346
        %2085 = vmatpush1.bf16.msra.mxu0 %v1345
        %2086 = vmatprep.subr.bf16.mxu0 %v1350
        %2087 = vmatpush1.bf16.msra.mxu0 %v1349
        %2088 = vmatprep.subr.bf16.mxu0 %v1354
        %2089 = vmatpush1.bf16.msra.mxu0 %v1353
        %2090 = vmatprep.subr.bf16.mxu0 %v1358
        %2091 = vmatpush1.bf16.msra.mxu0 %v1357
        %2092 = vmatprep.subr.bf16.mxu0 %v1362
        %2093 = vmatpush1.bf16.msra.mxu0 %v1361
        %2094 = vmatprep.subr.bf16.mxu0 %v1366
        %2095 = vmatpush1.bf16.msra.mxu0 %v1365
        %2096 = vmatprep.subr.bf16.mxu0 %v1370
        %2097 = vmatpush1.bf16.msra.mxu0 %v1369
        %2098 = vmatprep.mubr.bf16.mxu0 %v405
        %2099 = vmatmul.mubr.bf16.gmra.mrb[0].mxu0 %v404
        %v2100 = vpop.f32.mrb[0].mxu0
        %v2101 = vadd.f32 %v2018, %v2100
        %v2102 = vpop.f32.mrb[0].mxu0
        %v2103 = vadd.f32 %v2020, %v2102
        %v2104 = vpop.f32.mrb[0].mxu0
        %v2105 = vadd.f32 %v2022, %v2104
        %v2106 = vpop.f32.mrb[0].mxu0
        %v2107 = vadd.f32 %v2024, %v2106
        %2108 = vmatprep.mubr.bf16.mxu0 %v412
        %2109 = vmatmul.mubr.bf16.gmra.mrb[0].mxu0 %v411
        %v2110 = vpop.f32.mrb[0].mxu0
        %v2111 = vadd.f32 %v2028, %v2110
        %v2112 = vpop.f32.mrb[0].mxu0
        %v2113 = vadd.f32 %v2030, %v2112
        %v2114 = vpop.f32.mrb[0].mxu0
        %v2115 = vadd.f32 %v2032, %v2114
        %v2116 = vpop.f32.mrb[0].mxu0
        %v2117 = vadd.f32 %v2034, %v2116
        %2118 = vmatprep.mubr.bf16.mxu0 %v419
        %2119 = vmatmul.mubr.bf16.gmra.mrb[0].mxu0 %v418
        %v2120 = vpop.f32.mrb[0].mxu0
        %v2121 = vadd.f32 %v2038, %v2120
        %v2122 = vpop.f32.mrb[0].mxu0
        %v2123 = vadd.f32 %v2040, %v2122
        %v2124 = vpop.f32.mrb[0].mxu0
        %v2125 = vadd.f32 %v2042, %v2124
        %v2126 = vpop.f32.mrb[0].mxu0
        %v2127 = vadd.f32 %v2044, %v2126
        %2128 = vmatprep.mubr.bf16.mxu0 %v426
        %2129 = vmatmul.mubr.bf16.gmra.mrb[0].mxu0 %v425
        %v2130 = vpop.f32.mrb[0].mxu0
        %v2131 = vadd.f32 %v2048, %v2130
        %v2132 = vpop.f32.mrb[0].mxu0
        %v2133 = vadd.f32 %v2050, %v2132
        %v2134 = vpop.f32.mrb[0].mxu0
        %v2135 = vadd.f32 %v2052, %v2134
        %v2136 = vpop.f32.mrb[0].mxu0
        %v2137 = vadd.f32 %v2054, %v2136
        %2138 = vmatprep.mubr.bf16.mxu0 %v433
        %2139 = vmatmul.mubr.bf16.gmra.mrb[0].mxu0 %v432
        %v2140 = vpop.f32.mrb[0].mxu0
        %v2141 = vadd.f32 %v2058, %v2140
        %v2142 = vpop.f32.mrb[0].mxu0
        %v2143 = vadd.f32 %v2060, %v2142
        %v2144 = vpop.f32.mrb[0].mxu0
        %v2145 = vadd.f32 %v2062, %v2144
        %v2146 = vpop.f32.mrb[0].mxu0
        %v2147 = vadd.f32 %v2064, %v2146
        %2148 = vdwg.mxu0
        %2149 = vmatprep.subr.bf16.mxu0 %v1374
        %2150 = vmatpush1.bf16.msra.mxu0 %v1373
        %2151 = vmatprep.subr.bf16.mxu0 %v1378
        %2152 = vmatpush1.bf16.msra.mxu0 %v1377
        %2153 = vmatprep.subr.bf16.mxu0 %v1382
        %2154 = vmatpush1.bf16.msra.mxu0 %v1381
        %2155 = vmatprep.subr.bf16.mxu0 %v1386
        %2156 = vmatpush1.bf16.msra.mxu0 %v1385
        %2157 = vmatprep.subr.bf16.mxu0 %v1390
        %2158 = vmatpush1.bf16.msra.mxu0 %v1389
        %2159 = vmatprep.subr.bf16.mxu0 %v1394
        %2160 = vmatpush1.bf16.msra.mxu0 %v1393
        %2161 = vmatprep.subr.bf16.mxu0 %v1398
        %2162 = vmatpush1.bf16.msra.mxu0 %v1397
        %2163 = vmatprep.subr.bf16.mxu0 %v1402
        %2164 = vmatpush1.bf16.msra.mxu0 %v1401
        %2165 = vmatprep.subr.bf16.mxu0 %v1406
        %2166 = vmatpush1.bf16.msra.mxu0 %v1405
        %2167 = vmatprep.subr.bf16.mxu0 %v1410
        %2168 = vmatpush1.bf16.msra.mxu0 %v1409
        %2169 = vmatprep.subr.bf16.mxu0 %v1414
        %2170 = vmatpush1.bf16.msra.mxu0 %v1413
        %2171 = vmatprep.subr.bf16.mxu0 %v1418
        %2172 = vmatpush1.bf16.msra.mxu0 %v1417
        %2173 = vmatprep.subr.bf16.mxu0 %v1422
        %2174 = vmatpush1.bf16.msra.mxu0 %v1421
        %2175 = vmatprep.subr.bf16.mxu0 %v1426
        %2176 = vmatpush1.bf16.msra.mxu0 %v1425
        %2177 = vmatprep.subr.bf16.mxu0 %v1430
        %2178 = vmatpush1.bf16.msra.mxu0 %v1429
        %2179 = vmatprep.subr.bf16.mxu0 %v1434
        %2180 = vmatpush1.bf16.msra.mxu0 %v1433
        %2181 = vmatprep.mubr.bf16.mxu0 %v407
        %2182 = vmatmul.mubr.bf16.gmra.mrb[0].mxu0 %v406
        %v2183 = vpop.f32.mrb[0].mxu0
        %v2184 = vadd.f32 %v2101, %v2183
        %v2185 = vpop.f32.mrb[0].mxu0
        %v2186 = vadd.f32 %v2103, %v2185
        %v2187 = vpop.f32.mrb[0].mxu0
        %v2188 = vadd.f32 %v2105, %v2187
        %v2189 = vpop.f32.mrb[0].mxu0
        %v2190 = vadd.f32 %v2107, %v2189
        %2191 = vmatprep.mubr.bf16.mxu0 %v414
        %2192 = vmatmul.mubr.bf16.gmra.mrb[0].mxu0 %v413
        %v2193 = vpop.f32.mrb[0].mxu0
        %v2194 = vadd.f32 %v2111, %v2193
        %v2195 = vpop.f32.mrb[0].mxu0
        %v2196 = vadd.f32 %v2113, %v2195
        %v2197 = vpop.f32.mrb[0].mxu0
        %v2198 = vadd.f32 %v2115, %v2197
        %v2199 = vpop.f32.mrb[0].mxu0
        %v2200 = vadd.f32 %v2117, %v2199
        %2201 = vmatprep.mubr.bf16.mxu0 %v421
        %2202 = vmatmul.mubr.bf16.gmra.mrb[0].mxu0 %v420
        %v2203 = vpop.f32.mrb[0].mxu0
        %v2204 = vadd.f32 %v2121, %v2203
        %v2205 = vpop.f32.mrb[0].mxu0
        %v2206 = vadd.f32 %v2123, %v2205
        %v2207 = vpop.f32.mrb[0].mxu0
        %v2208 = vadd.f32 %v2125, %v2207
        %v2209 = vpop.f32.mrb[0].mxu0
        %v2210 = vadd.f32 %v2127, %v2209
        %2211 = vmatprep.mubr.bf16.mxu0 %v428
        %2212 = vmatmul.mubr.bf16.gmra.mrb[0].mxu0 %v427
        %v2213 = vpop.f32.mrb[0].mxu0
        %v2214 = vadd.f32 %v2131, %v2213
        %v2215 = vpop.f32.mrb[0].mxu0
        %v2216 = vadd.f32 %v2133, %v2215
        %v2217 = vpop.f32.mrb[0].mxu0
        %v2218 = vadd.f32 %v2135, %v2217
        %v2219 = vpop.f32.mrb[0].mxu0
        %v2220 = vadd.f32 %v2137, %v2219
        %2221 = vmatprep.mubr.bf16.mxu0 %v435
        %2222 = vmatmul.mubr.bf16.gmra.mrb[0].mxu0 %v434
        %v2223 = vpop.f32.mrb[0].mxu0
        %v2224 = vadd.f32 %v2141, %v2223
        %v2225 = vpop.f32.mrb[0].mxu0
        %v2226 = vadd.f32 %v2143, %v2225
        %v2227 = vpop.f32.mrb[0].mxu0
        %v2228 = vadd.f32 %v2145, %v2227
        %v2229 = vpop.f32.mrb[0].mxu0
        %v2230 = vadd.f32 %v2147, %v2229
        %2231 = vdwg.mxu0
        %2232 = vmatprep.subr.bf16.mxu0 %v1438
        %2233 = vmatpush1.bf16.msra.mxu0 %v1437
        %2234 = vmatprep.subr.bf16.mxu0 0
        %2235 = vmatpush1.bf16.msra.mxu0 0
        %2236 = vmatprep.subr.bf16.mxu0 0
        %2237 = vmatpush1.bf16.msra.mxu0 0
        %2238 = vmatprep.subr.bf16.mxu0 0
        %2239 = vmatpush1.bf16.msra.mxu0 0
        %2240 = vmatprep.subr.bf16.mxu0 0
        %2241 = vmatpush1.bf16.msra.mxu0 0
        %2242 = vmatprep.subr.bf16.mxu0 0
        %2243 = vmatpush1.bf16.msra.mxu0 0
        %2244 = vmatprep.subr.bf16.mxu0 0
        %2245 = vmatpush1.bf16.msra.mxu0 0
        %2246 = vmatprep.subr.bf16.mxu0 0
        %2247 = vmatpush1.bf16.msra.mxu0 0
        %2248 = vmatprep.subr.bf16.mxu0 0
        %2249 = vmatpush1.bf16.msra.mxu0 0
        %2250 = vmatprep.subr.bf16.mxu0 0
        %2251 = vmatpush1.bf16.msra.mxu0 0
        %2252 = vmatprep.subr.bf16.mxu0 0
        %2253 = vmatpush1.bf16.msra.mxu0 0
        %2254 = vmatprep.subr.bf16.mxu0 0
        %2255 = vmatpush1.bf16.msra.mxu0 0
        %2256 = vmatprep.subr.bf16.mxu0 0
        %2257 = vmatpush1.bf16.msra.mxu0 0
        %2258 = vmatprep.subr.bf16.mxu0 0
        %2259 = vmatpush1.bf16.msra.mxu0 0
        %2260 = vmatprep.subr.bf16.mxu0 0
        %2261 = vmatpush1.bf16.msra.mxu0 0
        %2262 = vmatprep.subr.bf16.mxu0 0
        %2263 = vmatpush1.bf16.msra.mxu0 0
        %2264 = vmatprep.mubr.bf16.mxu0 0
        %2265 = vmatmul.mubr.bf16.gmra.mrb[0].mxu0 %v1637
        %v2266 = vpop.f32.mrb[0].mxu0
        %v2267 = vadd.f32 %v2184, %v2266
        %v2268 = vpop.f32.mrb[0].mxu0
        %v2269 = vadd.f32 %v2186, %v2268
        %v2270 = vpop.f32.mrb[0].mxu0
        %v2271 = vadd.f32 %v2188, %v2270
        %v2272 = vpop.f32.mrb[0].mxu0
        %v2273 = vadd.f32 %v2190, %v2272
        %2274 = vmatprep.mubr.bf16.mxu0 0
        %2275 = vmatmul.mubr.bf16.gmra.mrb[0].mxu0 %v1640
        %v2276 = vpop.f32.mrb[0].mxu0
        %v2277 = vadd.f32 %v2194, %v2276
        %v2278 = vpop.f32.mrb[0].mxu0
        %v2279 = vadd.f32 %v2196, %v2278
        %v2280 = vpop.f32.mrb[0].mxu0
        %v2281 = vadd.f32 %v2198, %v2280
        %v2282 = vpop.f32.mrb[0].mxu0
        %v2283 = vadd.f32 %v2200, %v2282
        %2284 = vmatprep.mubr.bf16.mxu0 0
        %2285 = vmatmul.mubr.bf16.gmra.mrb[0].mxu0 %v1643
        %v2286 = vpop.f32.mrb[0].mxu0
        %v2287 = vadd.f32 %v2204, %v2286
        %v2288 = vpop.f32.mrb[0].mxu0
        %v2289 = vadd.f32 %v2206, %v2288
        %v2290 = vpop.f32.mrb[0].mxu0
        %v2291 = vadd.f32 %v2208, %v2290
        %v2292 = vpop.f32.mrb[0].mxu0
        %v2293 = vadd.f32 %v2210, %v2292
        %2294 = vmatprep.mubr.bf16.mxu0 0
        %2295 = vmatmul.mubr.bf16.gmra.mrb[0].mxu0 %v1646
        %v2296 = vpop.f32.mrb[0].mxu0
        %v2297 = vadd.f32 %v2214, %v2296
        %v2298 = vpop.f32.mrb[0].mxu0
        %v2299 = vadd.f32 %v2216, %v2298
        %v2300 = vpop.f32.mrb[0].mxu0
        %v2301 = vadd.f32 %v2218, %v2300
        %v2302 = vpop.f32.mrb[0].mxu0
        %v2303 = vadd.f32 %v2220, %v2302
        %2304 = vmatprep.mubr.bf16.mxu0 0
        %2305 = vmatmul.mubr.bf16.gmra.mrb[0].mxu0 %v1649
        %v2306 = vpop.f32.mrb[0].mxu0
        %v2307 = vadd.f32 %v2224, %v2306
        %v2308 = vpop.f32.mrb[0].mxu0
        %v2309 = vadd.f32 %v2226, %v2308
        %v2310 = vpop.f32.mrb[0].mxu0
        %v2311 = vadd.f32 %v2228, %v2310
        %v2312 = vpop.f32.mrb[0].mxu0
        %v2313 = vadd.f32 %v2230, %v2312
        %2314 = vdwg.mxu0
        %v2315 = vmax.f32 %v1935, 0.0
        %v2316 = vmax.f32 %v1937, 0.0
        %v2317 = vmax.f32 %v2267, 0.0
        %v2318 = vmax.f32 %v2269, 0.0
        %v2319 = vmax.f32 %v1939, 0.0
        %v2320 = vmax.f32 %v1941, 0.0
        %v2321 = vmax.f32 %v2271, 0.0
        %v2322 = vmax.f32 %v2273, 0.0
        %v2323 = vmax.f32 %v1945, 0.0
        %v2324 = vmax.f32 %v1947, 0.0
        %v2325 = vmax.f32 %v2277, 0.0
        %v2326 = vmax.f32 %v2279, 0.0
        %v2327 = vmax.f32 %v1949, 0.0
        %v2328 = vmax.f32 %v1951, 0.0
        %v2329 = vmax.f32 %v2281, 0.0
        %v2330 = vmax.f32 %v2283, 0.0
        %v2331 = vmax.f32 %v1955, 0.0
        %v2332 = vmax.f32 %v1957, 0.0
        %v2333 = vmax.f32 %v2287, 0.0
        %v2334 = vmax.f32 %v2289, 0.0
        %v2335 = vmax.f32 %v1959, 0.0
        %v2336 = vmax.f32 %v1961, 0.0
        %v2337 = vmax.f32 %v2291, 0.0
        %v2338 = vmax.f32 %v2293, 0.0
        %v2339 = vmax.f32 %v1965, 0.0
        %v2340 = vmax.f32 %v1967, 0.0
        %v2341 = vmax.f32 %v2297, 0.0
        %v2342 = vmax.f32 %v2299, 0.0
        %v2343 = vmax.f32 %v1969, 0.0
        %v2344 = vmax.f32 %v1971, 0.0
        %v2345 = vmax.f32 %v2301, 0.0
        %v2346 = vmax.f32 %v2303, 0.0
        %v2347 = vmax.f32 %v1975, 0.0
        %v2348 = vmax.f32 %v1977, 0.0
        %v2349 = vmax.f32 %v2307, 0.0
        %v2350 = vmax.f32 %v2309, 0.0
        %v2351 = vmax.f32 %v1979, 0.0
        %v2352 = vmax.f32 %v1981, 0.0
        %v2353 = vmax.f32 %v2311, 0.0
        %v2354 = vmax.f32 %v2313, 0.0
        %v2355 = vpack.c.bf16 %v2319, %v2315
        %v2356 = vpack.c.bf16 %v2320, %v2316
        %v2357 = vpack.c.bf16 %v2321, %v2317
        %v2358 = vpack.c.bf16 %v2322, %v2318
        %v2359 = vpack.c.bf16 %v2327, %v2323
        %v2360 = vpack.c.bf16 %v2328, %v2324
        %v2361 = vpack.c.bf16 %v2329, %v2325
        %v2362 = vpack.c.bf16 %v2330, %v2326
        %v2363 = vpack.c.bf16 %v2335, %v2331
        %v2364 = vpack.c.bf16 %v2336, %v2332
        %v2365 = vpack.c.bf16 %v2337, %v2333
        %v2366 = vpack.c.bf16 %v2338, %v2334
        %v2367 = vpack.c.bf16 %v2343, %v2339
        %v2368 = vpack.c.bf16 %v2344, %v2340
        %v2369 = vpack.c.bf16 %v2345, %v2341
        %v2370 = vpack.c.bf16 %v2346, %v2342
        %v2371 = vpack.c.bf16 %v2351, %v2347
        %v2372 = vpack.c.bf16 %v2352, %v2348
        %v2373 = vpack.c.bf16 %v2353, %v2349
        %v2374 = vpack.c.bf16 %v2354, %v2350
        %v2375 = vld [vmem:[#allocation6] sm:$0xf]
        %v2376 = vld [vmem:[#allocation6 + $0x4] sm:$0xf]
        %v2377 = vld [vmem:[#allocation6 + $0x8] sm:$0xf]
        %v2378 = vld [vmem:[#allocation6 + $0xc] sm:$0xf]
        %v2379 = vld [vmem:[#allocation6 + $0x10] sm:$0xf]
        %v2380 = vld [vmem:[#allocation6 + $0x14] sm:$0xf]
        %v2381 = vld [vmem:[#allocation6 + $0x18] sm:$0xf]
        %v2382 = vld [vmem:[#allocation6 + $0x1c] sm:$0xf]
        %v2383 = vld [vmem:[#allocation6 + $0x20] sm:$0xf]
        %v2384 = vld [vmem:[#allocation6 + $0x24] sm:$0xf]
        %v2385 = vld [vmem:[#allocation6 + $0x28] sm:$0xf]
        %v2386 = vld [vmem:[#allocation6 + $0x2c] sm:$0xf]
        %v2387 = vld [vmem:[#allocation6 + $0x30] sm:$0xf]
        %v2388 = vld [vmem:[#allocation6 + $0x34] sm:$0xf]
        %v2389 = vld [vmem:[#allocation6 + $0x38] sm:$0xf]
        %v2390 = vld [vmem:[#allocation6 + $0x3c] sm:$0xf]
        %v2391 = vld [vmem:[#allocation6 + $0x40] sm:$0xf]
        %v2392 = vld [vmem:[#allocation6 + $0x44] sm:$0xf]
        %v2393 = vld [vmem:[#allocation6 + $0x48] sm:$0xf]
        %v2394 = vld [vmem:[#allocation6 + $0x4c] sm:$0xf]
        %v2395 = vld [vmem:[#allocation6 + $0x50] sm:$0xf]
        %v2396 = vld [vmem:[#allocation6 + $0x54] sm:$0xf]
        %v2397 = vld [vmem:[#allocation6 + $0x58] sm:$0xf]
        %v2398 = vld [vmem:[#allocation6 + $0x5c] sm:$0xf]
        %v2399 = vld [vmem:[#allocation6 + $0x60] sm:$0xf]
        %v2400 = vld [vmem:[#allocation6 + $0x64] sm:$0xf]
        %v2401 = vld [vmem:[#allocation6 + $0x68] sm:$0xf]
        %v2402 = vld [vmem:[#allocation6 + $0x6c] sm:$0xf]
        %v2403 = vld [vmem:[#allocation6 + $0x70] sm:$0xf]
        %v2404 = vld [vmem:[#allocation6 + $0x74] sm:$0xf]
        %v2405 = vld [vmem:[#allocation6 + $0x78] sm:$0xf]
        %v2406 = vld [vmem:[#allocation6 + $0x7c] sm:$0xf]
        %v2407 = vld [vmem:[#allocation6 + $0x80] sm:$0xf]
        %v2408 = vld [vmem:[#allocation6 + $0x84] sm:$0xf]
        %v2409 = vld [vmem:[#allocation6 + $0x88] sm:$0xf]
        %v2410 = vld [vmem:[#allocation6 + $0x8c] sm:$0xf]
        %v2411 = vld [vmem:[#allocation6 + $0x90] sm:$0xf]
        %v2412 = vld [vmem:[#allocation6 + $0x94] sm:$0xf]
        %v2413 = vld [vmem:[#allocation6 + $0x98] sm:$0xf]
        %v2414 = vld [vmem:[#allocation6 + $0x9c] sm:$0xf]
        %v2415 = vld [vmem:[#allocation6 + $0xa0] sm:$0xf]
        %v2416 = vld [vmem:[#allocation6 + $0xa4] sm:$0xf]
        %v2417 = vld [vmem:[#allocation6 + $0xa8] sm:$0xf]
        %v2418 = vld [vmem:[#allocation6 + $0xac] sm:$0xf]
        %v2419 = vld [vmem:[#allocation6 + $0xb0] sm:$0xf]
        %v2420 = vld [vmem:[#allocation6 + $0xb4] sm:$0xf]
        %v2421 = vld [vmem:[#allocation6 + $0xb8] sm:$0xf]
        %v2422 = vld [vmem:[#allocation6 + $0xbc] sm:$0xf]
        %v2423 = vld [vmem:[#allocation6 + $0xc0] sm:$0xf]
        %v2424 = vld [vmem:[#allocation6 + $0xc4] sm:$0xf]
        %v2425 = vld [vmem:[#allocation6 + $0xc8] sm:$0xf]
        %v2426 = vld [vmem:[#allocation6 + $0xcc] sm:$0xf]
        %v2427 = vld [vmem:[#allocation6 + $0xd0] sm:$0xf]
        %v2428 = vld [vmem:[#allocation6 + $0xd4] sm:$0xf]
        %v2429 = vld [vmem:[#allocation6 + $0xd8] sm:$0xf]
        %v2430 = vld [vmem:[#allocation6 + $0xdc] sm:$0xf]
        %v2431 = vld [vmem:[#allocation6 + $0xe0] sm:$0xf]
        %v2432 = vld [vmem:[#allocation6 + $0xe4] sm:$0xf]
        %v2433 = vld [vmem:[#allocation6 + $0xe8] sm:$0xf]
        %v2434 = vld [vmem:[#allocation6 + $0xec] sm:$0xf]
        %v2435 = vld [vmem:[#allocation6 + $0xf0] sm:$0xf]
        %v2436 = vld [vmem:[#allocation6 + $0xf4] sm:$0xf]
        %v2437 = vld [vmem:[#allocation6 + $0xf8] sm:$0xf]
        %v2438 = vld [vmem:[#allocation6 + $0xfc] sm:$0xf]
        %v2439 = vld [vmem:[%s4] sm:$0x1]
        %v2441 = vlaneseq
        %v2442 = vshrl.u32 %v2441, 7
        %v2443 = vsub.s32 0, %v2442
        %v2444 = vrot.slane %v2439, %v2443
        %v2510 = vunpack.c.l.b16 %v2375
        %v2511 = vunpack.c.l.b16 %v2376
        %v2512 = vunpack.c.l.b16 %v2377
        %v2513 = vunpack.c.l.b16 %v2378
        %v2514 = vunpack.c.l.b16 %v2379
        %v2515 = vunpack.c.l.b16 %v2380
        %v2516 = vunpack.c.l.b16 %v2381
        %v2517 = vunpack.c.l.b16 %v2382
        %v2518 = vunpack.c.l.b16 %v2383
        %v2519 = vunpack.c.l.b16 %v2384
        %v2520 = vunpack.c.l.b16 %v2385
        %v2521 = vunpack.c.l.b16 %v2386
        %v2522 = vunpack.c.l.b16 %v2387
        %v2523 = vunpack.c.l.b16 %v2388
        %v2524 = vunpack.c.l.b16 %v2389
        %v2525 = vunpack.c.l.b16 %v2390
        %v2526 = vunpack.c.l.b16 %v2391
        %v2527 = vunpack.c.l.b16 %v2392
        %v2528 = vunpack.c.l.b16 %v2393
        %v2529 = vunpack.c.l.b16 %v2394
        %v2530 = vunpack.c.l.b16 %v2395
        %v2531 = vunpack.c.l.b16 %v2396
        %v2532 = vunpack.c.l.b16 %v2397
        %v2533 = vunpack.c.l.b16 %v2398
        %v2534 = vunpack.c.l.b16 %v2399
        %v2535 = vunpack.c.l.b16 %v2400
        %v2536 = vunpack.c.l.b16 %v2401
        %v2537 = vunpack.c.l.b16 %v2402
        %v2538 = vunpack.c.l.b16 %v2403
        %v2539 = vunpack.c.l.b16 %v2404
        %v2540 = vunpack.c.l.b16 %v2405
        %v2541 = vunpack.c.l.b16 %v2406
        %v2542 = vunpack.c.l.b16 %v2407
        %v2543 = vunpack.c.l.b16 %v2408
        %v2544 = vunpack.c.l.b16 %v2409
        %v2545 = vunpack.c.l.b16 %v2410
        %v2546 = vunpack.c.l.b16 %v2411
        %v2547 = vunpack.c.l.b16 %v2412
        %v2548 = vunpack.c.l.b16 %v2413
        %v2549 = vunpack.c.l.b16 %v2414
        %v2550 = vunpack.c.l.b16 %v2415
        %v2551 = vunpack.c.l.b16 %v2416
        %v2552 = vunpack.c.l.b16 %v2417
        %v2553 = vunpack.c.l.b16 %v2418
        %v2554 = vunpack.c.l.b16 %v2419
        %v2555 = vunpack.c.l.b16 %v2420
        %v2556 = vunpack.c.l.b16 %v2421
        %v2557 = vunpack.c.l.b16 %v2422
        %v2558 = vunpack.c.l.b16 %v2423
        %v2559 = vunpack.c.l.b16 %v2424
        %v2560 = vunpack.c.l.b16 %v2425
        %v2561 = vunpack.c.l.b16 %v2426
        %v2562 = vunpack.c.l.b16 %v2427
        %v2563 = vunpack.c.l.b16 %v2428
        %v2564 = vunpack.c.l.b16 %v2429
        %v2565 = vunpack.c.l.b16 %v2430
        %v2566 = vunpack.c.l.b16 %v2431
        %v2567 = vunpack.c.l.b16 %v2432
        %v2568 = vunpack.c.l.b16 %v2433
        %v2569 = vunpack.c.l.b16 %v2434
        %v2570 = vunpack.c.l.b16 %v2435
        %v2571 = vunpack.c.l.b16 %v2436
        %v2572 = vunpack.c.l.b16 %v2437
        %v2573 = vunpack.c.l.b16 %v2438
        %v2574 = vpack.c.b16 %v2511, %v2510
        %v2575 = vpack.c.b16 %v2513, %v2512
        %v2576 = vpack.c.b16 %v2515, %v2514
        %v2577 = vpack.c.b16 %v2517, %v2516
        %v2578 = vpack.c.b16 %v2519, %v2518
        %v2579 = vpack.c.b16 %v2521, %v2520
        %v2580 = vpack.c.b16 %v2523, %v2522
        %v2581 = vpack.c.b16 %v2525, %v2524
        %v2582 = vpack.c.b16 %v2527, %v2526
        %v2583 = vpack.c.b16 %v2529, %v2528
        %v2584 = vpack.c.b16 %v2531, %v2530
        %v2585 = vpack.c.b16 %v2533, %v2532
        %v2586 = vpack.c.b16 %v2535, %v2534
        %v2587 = vpack.c.b16 %v2537, %v2536
        %v2588 = vpack.c.b16 %v2539, %v2538
        %v2589 = vpack.c.b16 %v2541, %v2540
        %v2590 = vpack.c.b16 %v2543, %v2542
        %v2591 = vpack.c.b16 %v2545, %v2544
        %v2592 = vpack.c.b16 %v2547, %v2546
        %v2593 = vpack.c.b16 %v2549, %v2548
        %v2594 = vpack.c.b16 %v2551, %v2550
        %v2595 = vpack.c.b16 %v2553, %v2552
        %v2596 = vpack.c.b16 %v2555, %v2554
        %v2597 = vpack.c.b16 %v2557, %v2556
        %v2598 = vpack.c.b16 %v2559, %v2558
        %v2599 = vpack.c.b16 %v2561, %v2560
        %v2600 = vpack.c.b16 %v2563, %v2562
        %v2601 = vpack.c.b16 %v2565, %v2564
        %v2602 = vpack.c.b16 %v2567, %v2566
        %v2603 = vpack.c.b16 %v2569, %v2568
        %v2604 = vpack.c.b16 %v2571, %v2570
        %v2605 = vpack.c.b16 %v2573, %v2572
        %2638 = vmatprep.subr.bf16.mxu0 0
        %2639 = vmatpush1.bf16.msra.mxu0 %v2574
        %2640 = vmatprep.subr.bf16.mxu0 0
        %2641 = vmatpush1.bf16.msra.mxu0 %v2575
        %2642 = vmatprep.subr.bf16.mxu0 0
        %2643 = vmatpush1.bf16.msra.mxu0 %v2576
        %2644 = vmatprep.subr.bf16.mxu0 0
        %2645 = vmatpush1.bf16.msra.mxu0 %v2577
        %2646 = vmatprep.subr.bf16.mxu0 0
        %2647 = vmatpush1.bf16.msra.mxu0 %v2578
        %2648 = vmatprep.subr.bf16.mxu0 0
        %2649 = vmatpush1.bf16.msra.mxu0 %v2579
        %2650 = vmatprep.subr.bf16.mxu0 0
        %2651 = vmatpush1.bf16.msra.mxu0 %v2580
        %2652 = vmatprep.subr.bf16.mxu0 0
        %2653 = vmatpush1.bf16.msra.mxu0 %v2581
        %2654 = vmatprep.subr.bf16.mxu0 0
        %2655 = vmatpush1.bf16.msra.mxu0 %v2582
        %2656 = vmatprep.subr.bf16.mxu0 0
        %2657 = vmatpush1.bf16.msra.mxu0 %v2583
        %2658 = vmatprep.subr.bf16.mxu0 0
        %2659 = vmatpush1.bf16.msra.mxu0 %v2584
        %2660 = vmatprep.subr.bf16.mxu0 0
        %2661 = vmatpush1.bf16.msra.mxu0 %v2585
        %2662 = vmatprep.subr.bf16.mxu0 0
        %2663 = vmatpush1.bf16.msra.mxu0 %v2586
        %2664 = vmatprep.subr.bf16.mxu0 0
        %2665 = vmatpush1.bf16.msra.mxu0 %v2587
        %2666 = vmatprep.subr.bf16.mxu0 0
        %2667 = vmatpush1.bf16.msra.mxu0 %v2588
        %2668 = vmatprep.subr.bf16.mxu0 0
        %2669 = vmatpush1.bf16.msra.mxu0 %v2589
        %2670 = vmatprep.mubr.bf16.mxu0 %v2356
        %2671 = vmatmul.mubr.bf16.gmra.mrb[0].mxu0 %v2355
        %v2672 = vpop.f32.mrb[0].mxu0
        %v2673 = vadd.f32 %v2444, %v2672
        %v2674 = vpop.f32.mrb[0].mxu0
        %v2675 = vpop.f32.mrb[0].mxu0
        %v2676 = vadd.f32 %v2444, %v2675
        %v2677 = vpop.f32.mrb[0].mxu0
        %2678 = vmatprep.mubr.bf16.mxu0 %v2360
        %2679 = vmatmul.mubr.bf16.gmra.mrb[0].mxu0 %v2359
        %v2680 = vpop.f32.mrb[0].mxu0
        %v2681 = vadd.f32 %v2444, %v2680
        %v2682 = vpop.f32.mrb[0].mxu0
        %v2683 = vpop.f32.mrb[0].mxu0
        %v2684 = vadd.f32 %v2444, %v2683
        %v2685 = vpop.f32.mrb[0].mxu0
        %2686 = vmatprep.mubr.bf16.mxu0 %v2364
        %2687 = vmatmul.mubr.bf16.gmra.mrb[0].mxu0 %v2363
        %v2688 = vpop.f32.mrb[0].mxu0
        %v2689 = vadd.f32 %v2444, %v2688
        %v2690 = vpop.f32.mrb[0].mxu0
        %v2691 = vpop.f32.mrb[0].mxu0
        %v2692 = vadd.f32 %v2444, %v2691
        %v2693 = vpop.f32.mrb[0].mxu0
        %2694 = vmatprep.mubr.bf16.mxu0 %v2368
        %2695 = vmatmul.mubr.bf16.gmra.mrb[0].mxu0 %v2367
        %v2696 = vpop.f32.mrb[0].mxu0
        %v2697 = vadd.f32 %v2444, %v2696
        %v2698 = vpop.f32.mrb[0].mxu0
        %v2699 = vpop.f32.mrb[0].mxu0
        %v2700 = vadd.f32 %v2444, %v2699
        %v2701 = vpop.f32.mrb[0].mxu0
        %2702 = vmatprep.mubr.bf16.mxu0 %v2372
        %2703 = vmatmul.mubr.bf16.gmra.mrb[0].mxu0 %v2371
        %v2704 = vpop.f32.mrb[0].mxu0
        %v2705 = vadd.f32 %v2444, %v2704
        %v2706 = vpop.f32.mrb[0].mxu0
        %v2707 = vpop.f32.mrb[0].mxu0
        %v2708 = vadd.f32 %v2444, %v2707
        %v2709 = vpop.f32.mrb[0].mxu0
        %2710 = vdwg.mxu0
        %2711 = vmatprep.subr.bf16.mxu0 0
        %2712 = vmatpush1.bf16.msra.mxu0 %v2590
        %2713 = vmatprep.subr.bf16.mxu0 0
        %2714 = vmatpush1.bf16.msra.mxu0 %v2591
        %2715 = vmatprep.subr.bf16.mxu0 0
        %2716 = vmatpush1.bf16.msra.mxu0 %v2592
        %2717 = vmatprep.subr.bf16.mxu0 0
        %2718 = vmatpush1.bf16.msra.mxu0 %v2593
        %2719 = vmatprep.subr.bf16.mxu0 0
        %2720 = vmatpush1.bf16.msra.mxu0 %v2594
        %2721 = vmatprep.subr.bf16.mxu0 0
        %2722 = vmatpush1.bf16.msra.mxu0 %v2595
        %2723 = vmatprep.subr.bf16.mxu0 0
        %2724 = vmatpush1.bf16.msra.mxu0 %v2596
        %2725 = vmatprep.subr.bf16.mxu0 0
        %2726 = vmatpush1.bf16.msra.mxu0 %v2597
        %2727 = vmatprep.subr.bf16.mxu0 0
        %2728 = vmatpush1.bf16.msra.mxu0 %v2598
        %2729 = vmatprep.subr.bf16.mxu0 0
        %2730 = vmatpush1.bf16.msra.mxu0 %v2599
        %2731 = vmatprep.subr.bf16.mxu0 0
        %2732 = vmatpush1.bf16.msra.mxu0 %v2600
        %2733 = vmatprep.subr.bf16.mxu0 0
        %2734 = vmatpush1.bf16.msra.mxu0 %v2601
        %2735 = vmatprep.subr.bf16.mxu0 0
        %2736 = vmatpush1.bf16.msra.mxu0 %v2602
        %2737 = vmatprep.subr.bf16.mxu0 0
        %2738 = vmatpush1.bf16.msra.mxu0 %v2603
        %2739 = vmatprep.subr.bf16.mxu0 0
        %2740 = vmatpush1.bf16.msra.mxu0 %v2604
        %2741 = vmatprep.subr.bf16.mxu0 0
        %2742 = vmatpush1.bf16.msra.mxu0 %v2605
        %2743 = vmatprep.mubr.bf16.mxu0 %v2358
        %2744 = vmatmul.mubr.bf16.gmra.mrb[0].mxu0 %v2357
        %v2745 = vpop.f32.mrb[0].mxu0
        %v2746 = vadd.f32 %v2673, %v2745
        %v2747 = vpop.f32.mrb[0].mxu0
        %v2748 = vpop.f32.mrb[0].mxu0
        %v2749 = vadd.f32 %v2676, %v2748
        %v2750 = vpop.f32.mrb[0].mxu0
        %2751 = vmatprep.mubr.bf16.mxu0 %v2362
        %2752 = vmatmul.mubr.bf16.gmra.mrb[0].mxu0 %v2361
        %v2753 = vpop.f32.mrb[0].mxu0
        %v2754 = vadd.f32 %v2681, %v2753
        %v2755 = vpop.f32.mrb[0].mxu0
        %v2756 = vpop.f32.mrb[0].mxu0
        %v2757 = vadd.f32 %v2684, %v2756
        %v2758 = vpop.f32.mrb[0].mxu0
        %2759 = vmatprep.mubr.bf16.mxu0 %v2366
        %2760 = vmatmul.mubr.bf16.gmra.mrb[0].mxu0 %v2365
        %v2761 = vpop.f32.mrb[0].mxu0
        %v2762 = vadd.f32 %v2689, %v2761
        %v2763 = vpop.f32.mrb[0].mxu0
        %v2764 = vpop.f32.mrb[0].mxu0
        %v2765 = vadd.f32 %v2692, %v2764
        %v2766 = vpop.f32.mrb[0].mxu0
        %2767 = vmatprep.mubr.bf16.mxu0 %v2370
        %2768 = vmatmul.mubr.bf16.gmra.mrb[0].mxu0 %v2369
        %v2769 = vpop.f32.mrb[0].mxu0
        %v2770 = vadd.f32 %v2697, %v2769
        %v2771 = vpop.f32.mrb[0].mxu0
        %v2772 = vpop.f32.mrb[0].mxu0
        %v2773 = vadd.f32 %v2700, %v2772
        %v2774 = vpop.f32.mrb[0].mxu0
        %2775 = vmatprep.mubr.bf16.mxu0 %v2374
        %2776 = vmatmul.mubr.bf16.gmra.mrb[0].mxu0 %v2373
        %v2777 = vpop.f32.mrb[0].mxu0
        %v2778 = vadd.f32 %v2705, %v2777
        %v2779 = vpop.f32.mrb[0].mxu0
        %v2780 = vpop.f32.mrb[0].mxu0
        %v2781 = vadd.f32 %v2708, %v2780
        %v2782 = vpop.f32.mrb[0].mxu0
        %2783 = vdwg.mxu0
        %v2784 = vmax.f32 %v2746, 0.0
        %v2785 = vmax.f32 %v2749, 0.0
        %v2786 = vmax.f32 %v2754, 0.0
        %v2787 = vmax.f32 %v2757, 0.0
        %v2788 = vmax.f32 %v2762, 0.0
        %v2789 = vmax.f32 %v2765, 0.0
        %v2790 = vmax.f32 %v2770, 0.0
        %v2791 = vmax.f32 %v2773, 0.0
        %v2792 = vmax.f32 %v2778, 0.0
        %v2793 = vmax.f32 %v2781, 0.0
        %v2794 = vpack.c.bf16 %v2785, %v2784
        %v2795 = vpack.c.bf16 %v2787, %v2786
        %v2796 = vpack.c.bf16 %v2789, %v2788
        %v2797 = vpack.c.bf16 %v2791, %v2790
        %v2798 = vpack.c.bf16 %v2793, %v2792
        %v2799 = vld [vmem:[%s5] sm:$0xf]
        %v2800 = vld [vmem:[%s5 + $0x4] sm:$0xf]
        %v2801 = vld [vmem:[%s5 + $0x8] sm:$0xf]
        %v2802 = vld [vmem:[%s5 + $0xc] sm:$0xf]
        %v2803 = vld [vmem:[%s5 + $0x10] sm:$0xf]
        %v2804 = vld [vmem:[%s5 + $0x14] sm:$0xf]
        %v2805 = vld [vmem:[%s5 + $0x18] sm:$0xf]
        %v2806 = vld [vmem:[%s5 + $0x1c] sm:$0xf]
        %v2807 = vld [vmem:[%s5 + $0x20] sm:$0xf]
        %v2808 = vld [vmem:[%s5 + $0x24] sm:$0xf]
        %v2809 = vld [vmem:[%s5 + $0x28] sm:$0xf]
        %v2810 = vld [vmem:[%s5 + $0x2c] sm:$0xf]
        %v2811 = vld [vmem:[%s5 + $0x30] sm:$0xf]
        %v2812 = vld [vmem:[%s5 + $0x34] sm:$0xf]
        %v2813 = vld [vmem:[%s5 + $0x38] sm:$0xf]
        %v2814 = vld [vmem:[%s5 + $0x3c] sm:$0xf]
        %v2815 = vld [vmem:[%s6] sm:$0x1]
        %v2817 = vlaneseq
        %v2818 = vshrl.u32 %v2817, 7
        %v2819 = vsub.s32 0, %v2818
        %v2820 = vrot.slane %v2815, %v2819
        %v2838 = vunpack.c.l.b16 %v2799
        %v2839 = vunpack.c.l.b16 %v2800
        %v2840 = vunpack.c.l.b16 %v2801
        %v2841 = vunpack.c.l.b16 %v2802
        %v2842 = vunpack.c.l.b16 %v2803
        %v2843 = vunpack.c.l.b16 %v2804
        %v2844 = vunpack.c.l.b16 %v2805
        %v2845 = vunpack.c.l.b16 %v2806
        %v2846 = vunpack.c.l.b16 %v2807
        %v2847 = vunpack.c.l.b16 %v2808
        %v2848 = vunpack.c.l.b16 %v2809
        %v2849 = vunpack.c.l.b16 %v2810
        %v2850 = vunpack.c.l.b16 %v2811
        %v2851 = vunpack.c.l.b16 %v2812
        %v2852 = vunpack.c.l.b16 %v2813
        %v2853 = vunpack.c.l.b16 %v2814
        %v2854 = vpack.c.b16 %v2839, %v2838
        %v2855 = vpack.c.b16 %v2841, %v2840
        %v2856 = vpack.c.b16 %v2843, %v2842
        %v2857 = vpack.c.b16 %v2845, %v2844
        %v2858 = vpack.c.b16 %v2847, %v2846
        %v2859 = vpack.c.b16 %v2849, %v2848
        %v2860 = vpack.c.b16 %v2851, %v2850
        %v2861 = vpack.c.b16 %v2853, %v2852
        %2870 = vmatprep.subr.bf16.mxu0 0
        %2871 = vmatpush1.bf16.msra.mxu0 %v2854
        %2872 = vmatprep.subr.bf16.mxu0 0
        %2873 = vmatpush1.bf16.msra.mxu0 %v2855
        %2874 = vmatprep.subr.bf16.mxu0 0
        %2875 = vmatpush1.bf16.msra.mxu0 %v2856
        %2876 = vmatprep.subr.bf16.mxu0 0
        %2877 = vmatpush1.bf16.msra.mxu0 %v2857
        %2878 = vmatprep.subr.bf16.mxu0 0
        %2879 = vmatpush1.bf16.msra.mxu0 %v2858
        %2880 = vmatprep.subr.bf16.mxu0 0
        %2881 = vmatpush1.bf16.msra.mxu0 %v2859
        %2882 = vmatprep.subr.bf16.mxu0 0
        %2883 = vmatpush1.bf16.msra.mxu0 %v2860
        %2884 = vmatprep.subr.bf16.mxu0 0
        %2885 = vmatpush1.bf16.msra.mxu0 %v2861
        %2886 = vmatprep.subr.bf16.mxu0 0
        %2887 = vmatpush1.bf16.msra.mxu0 0
        %2888 = vmatprep.subr.bf16.mxu0 0
        %2889 = vmatpush1.bf16.msra.mxu0 0
        %2890 = vmatprep.subr.bf16.mxu0 0
        %2891 = vmatpush1.bf16.msra.mxu0 0
        %2892 = vmatprep.subr.bf16.mxu0 0
        %2893 = vmatpush1.bf16.msra.mxu0 0
        %2894 = vmatprep.subr.bf16.mxu0 0
        %2895 = vmatpush1.bf16.msra.mxu0 0
        %2896 = vmatprep.subr.bf16.mxu0 0
        %2897 = vmatpush1.bf16.msra.mxu0 0
        %2898 = vmatprep.subr.bf16.mxu0 0
        %2899 = vmatpush1.bf16.msra.mxu0 0
        %2900 = vmatprep.subr.bf16.mxu0 0
        %2901 = vmatpush1.bf16.msra.mxu0 0
        %2902 = vmatprep.mubr.bf16.mxu0 0
        %2903 = vmatmul.mubr.bf16.gmra.mrb[0].mxu0 %v2794
        %v2904 = vpop.f32.mrb[0].mxu0
        %v2905 = vadd.f32 %v2820, %v2904
        %v2906 = vpop.f32.mrb[0].mxu0
        %v2907 = vpop.f32.mrb[0].mxu0
        %v2908 = vadd.f32 %v2820, %v2907
        %v2909 = vpop.f32.mrb[0].mxu0
        %2910 = vmatprep.mubr.bf16.mxu0 0
        %2911 = vmatmul.mubr.bf16.gmra.mrb[0].mxu0 %v2795
        %v2912 = vpop.f32.mrb[0].mxu0
        %v2913 = vadd.f32 %v2820, %v2912
        %v2914 = vpop.f32.mrb[0].mxu0
        %v2915 = vpop.f32.mrb[0].mxu0
        %v2916 = vadd.f32 %v2820, %v2915
        %v2917 = vpop.f32.mrb[0].mxu0
        %2918 = vmatprep.mubr.bf16.mxu0 0
        %2919 = vmatmul.mubr.bf16.gmra.mrb[0].mxu0 %v2796
        %v2920 = vpop.f32.mrb[0].mxu0
        %v2921 = vadd.f32 %v2820, %v2920
        %v2922 = vpop.f32.mrb[0].mxu0
        %v2923 = vpop.f32.mrb[0].mxu0
        %v2924 = vadd.f32 %v2820, %v2923
        %v2925 = vpop.f32.mrb[0].mxu0
        %2926 = vmatprep.mubr.bf16.mxu0 0
        %2927 = vmatmul.mubr.bf16.gmra.mrb[0].mxu0 %v2797
        %v2928 = vpop.f32.mrb[0].mxu0
        %v2929 = vadd.f32 %v2820, %v2928
        %v2930 = vpop.f32.mrb[0].mxu0
        %v2931 = vpop.f32.mrb[0].mxu0
        %v2932 = vadd.f32 %v2820, %v2931
        %v2933 = vpop.f32.mrb[0].mxu0
        %2934 = vmatprep.mubr.bf16.mxu0 0
        %2935 = vmatmul.mubr.bf16.gmra.mrb[0].mxu0 %v2798
        %v2936 = vpop.f32.mrb[0].mxu0
        %v2937 = vadd.f32 %v2820, %v2936
        %v2938 = vpop.f32.mrb[0].mxu0
        %v2939 = vpop.f32.mrb[0].mxu0
        %v2940 = vadd.f32 %v2820, %v2939
        %v2941 = vpop.f32.mrb[0].mxu0
        %2942 = vdwg.mxu0
        %v2943 = vxor.u32 %v2905, 2147483648
        %v2944 = vxor.u32 %v2908, 2147483648
        %v2945 = vxor.u32 %v2913, 2147483648
        %v2946 = vxor.u32 %v2916, 2147483648
        %v2947 = vxor.u32 %v2921, 2147483648
        %v2948 = vxor.u32 %v2924, 2147483648
        %v2949 = vxor.u32 %v2929, 2147483648
        %v2950 = vxor.u32 %v2932, 2147483648
        %v2951 = vxor.u32 %v2937, 2147483648
        %v2952 = vxor.u32 %v2940, 2147483648
        %v2953 = vmul.f32 %v2943, 1.442695
        %v2954 = vpow.pop %v2953
        %v2955 = vmul.f32 %v2944, 1.442695
        %v2956 = vpow.pop %v2955
        %v2957 = vmul.f32 %v2945, 1.442695
        %v2958 = vpow.pop %v2957
        %v2959 = vmul.f32 %v2946, 1.442695
        %v2960 = vpow.pop %v2959
        %v2961 = vmul.f32 %v2947, 1.442695
        %v2962 = vpow.pop %v2961
        %v2963 = vmul.f32 %v2948, 1.442695
        %v2964 = vpow.pop %v2963
        %v2965 = vmul.f32 %v2949, 1.442695
        %v2966 = vpow.pop %v2965
        %v2967 = vmul.f32 %v2950, 1.442695
        %v2968 = vpow.pop %v2967
        %v2969 = vmul.f32 %v2951, 1.442695
        %v2970 = vpow.pop %v2969
        %v2971 = vmul.f32 %v2952, 1.442695
        %v2972 = vpow.pop %v2971
        %v2973 = vadd.f32 %v2954, 1.0
        %v2974 = vadd.f32 %v2956, 1.0
        %v2975 = vadd.f32 %v2958, 1.0
        %v2976 = vadd.f32 %v2960, 1.0
        %v2977 = vadd.f32 %v2962, 1.0
        %v2978 = vadd.f32 %v2964, 1.0
        %v2979 = vadd.f32 %v2966, 1.0
        %v2980 = vadd.f32 %v2968, 1.0
        %v2981 = vadd.f32 %v2970, 1.0
        %v2982 = vadd.f32 %v2972, 1.0
        %v2983 = vrcp.pop %v2973
        %v2984 = vmul.f32 1.0, %v2983
        %v2985 = vrcp.pop %v2974
        %v2986 = vmul.f32 1.0, %v2985
        %v2987 = vrcp.pop %v2975
        %v2988 = vmul.f32 1.0, %v2987
        %v2989 = vrcp.pop %v2976
        %v2990 = vmul.f32 1.0, %v2989
        %v2991 = vrcp.pop %v2977
        %v2992 = vmul.f32 1.0, %v2991
        %v2993 = vrcp.pop %v2978
        %v2994 = vmul.f32 1.0, %v2993
        %v2995 = vrcp.pop %v2979
        %v2996 = vmul.f32 1.0, %v2995
        %v2997 = vrcp.pop %v2980
        %v2998 = vmul.f32 1.0, %v2997
        %v2999 = vrcp.pop %v2981
        %v3000 = vmul.f32 1.0, %v2999
        %v3001 = vrcp.pop %v2982
        %v3002 = vmul.f32 1.0, %v3001
        %vm3003 = vcmask 80896
        %3004 = vst.msk [vmem:[%s329] sm:$0xff] %vm3003, %v2984
        %3005 = vst.msk [vmem:[%s329 + $0x8] sm:$0xff] %vm3003, %v2986
        %3006 = vst.msk [vmem:[%s329 + $0x10] sm:$0xff] %vm3003, %v2988
        %3007 = vst.msk [vmem:[%s329 + $0x18] sm:$0xff] %vm3003, %v2990
        %3008 = vst.msk [vmem:[%s329 + $0x20] sm:$0xff] %vm3003, %v2992
        %3009 = vst.msk [vmem:[%s329 + $0x28] sm:$0xff] %vm3003, %v2994
        %3010 = vst.msk [vmem:[%s329 + $0x30] sm:$0xff] %vm3003, %v2996
        %3011 = vst.msk [vmem:[%s329 + $0x38] sm:$0xff] %vm3003, %v2998
        %3012 = vst.msk [vmem:[%s329 + $0x40] sm:$0xff] %vm3003, %v3000
        %3013 = vst.msk [vmem:[%s329 + $0x48] sm:$0xff] %vm3003, %v3002
        %s3014 = smul.u32 10, %s22
        %p3015 = scmp.lt.s32.totalorder %s3014, 19
        %s3016 = scalar_select %p3015, %s3014, 19
        %s3017 = smul.addr %s3016, 8
        %s3018 = scalar_lea.vmem %s7, %s3017
        // Predicated region
        $region61: #{tpu_custom_call.1} parent=47 // pred_check
          %p3019 = pneg %p192
        $region62: #{tpu_custom_call.1} parent=47 // pred_check_branch
          %3021 = sbr.rel (%p3019) target = $region64
        $region63: #{tpu_custom_call.1} parent=47 // pred_region
          %s3022 = smul.u32 10, %s22
        $region64: #{tpu_custom_call.1} parent=47 // pred_fallthru
          _
      $region48: #{tpu_custom_call.1} parent=5 // pred_fallthru
        _
      %p3023 = scmp.le.s32.totalorder 2, %s17
      // Predicated region
      $region65: #{tpu_custom_call.1} parent=5 // pred_check
        %p3024 = pneg %p3023
      $region66: #{tpu_custom_call.1} parent=5 // pred_check_branch
        %3026 = sbr.rel (%p3024) target = $region68
      $region67: #{tpu_custom_call.1} parent=5 // pred_region
        %s3027 = ssub.s32 %s17, 2
        // Predicated region
        $region69: #{tpu_custom_call.1} parent=67 // pred_check
          %p3028 = pneg %p198
        $region70: #{tpu_custom_call.1} parent=67 // pred_check_branch
          %3030 = sbr.rel (%p3028) target = $region72
        $region71: #{tpu_custom_call.1} parent=67 // pred_region
          %s3031 = smul.u32 10, %s23
          %p3032 = scmp.lt.s32.totalorder %s3031, 19
          %s3033 = scalar_select %p3032, %s3031, 19
          %s3034 = smul.addr %s3033, 8
          %s3035 = scalar_lea.vmem %s7, %s3034
        $region72: #{tpu_custom_call.1} parent=67 // pred_fallthru
          _
      $region68: #{tpu_custom_call.1} parent=5 // pred_fallthru
        _
    $region6: #{tpu_custom_call.1} parent=1 // loop_footer
      %s21 = sadd.s32 1, %s17
    $region7: #{tpu_custom_call.1} parent=1 // loop_footer_branch
      %16 = sbr.rel target = $region3
    $region8: #{tpu_custom_call.1} parent=1 // loop_exit
      _
    %3036 = vsyncpa [#allocation3], 1
    %s3037 = scalar_lea.sflag [#allocation3], 1
    %3038 = vsyncpa %s3037, 1
    %3039 = vsyncpa [#allocation5], 1

</llo_original>
